<compile_context>
chip_gen: v7x
topology: tpu7x:2x2x1
jax: 0.10.0
libtpu: 0.0.40
codegen_flags: <defaults>
</compile_context>

<pallas_src>
import math

import numpy as np
import jax
import jax.numpy as jnp
from jax import lax
from jax.experimental import pallas as pl
from jax.experimental.pallas import tpu as pltpu


def log2_diff(a, b):
    return int(round(math.log2(a) - math.log2(b)))


# ----------------------------------------------------------------------------
# Parameter construction (deterministic, synthetic).
# ----------------------------------------------------------------------------
def init_params(key, imsize, nc_in, z_dims):
    n_down = log2_diff(imsize, 1)
    params = {"convs": []}
    nc = nc_in
    for _ in range(n_down):
        next_nc = min(z_dims, nc * 2)
        key, k1, k2 = jax.random.split(key, 3)
        w = jax.random.normal(k1, (3, 3, nc, next_nc), jnp.float32) * (
            1.0 / math.sqrt(9 * nc))
        b = jax.random.normal(k2, (next_nc,), jnp.float32) * 0.1
        params["convs"].append((w, b))
        nc = next_nc
    assert nc == z_dims
    # StyleGAN2 FullyConnectedLayer: weight randn (out, in), bias 0,
    # runtime weight_gain = 1/sqrt(in_features), bias_gain = 1.
    key, k1 = jax.random.split(key)
    w_fc = jax.random.normal(k1, (z_dims, z_dims), jnp.float32)
    b_fc = jnp.zeros((z_dims,), jnp.float32)
    params["fc"] = (w_fc, b_fc)
    return params


# ----------------------------------------------------------------------------
# Host-side preprocessing: fold each 3x3 / stride-2 / pad-1 conv into ONE
# matmul against a stacked (3*W*Cin, Wo*Cout) matrix.
# ----------------------------------------------------------------------------
def _conv_to_stacked_matmul(w_hwio, b, H, W):
    """Conv output row ho (all wo, cout) = [tap0 | tap1 | tap2] @ M + bias_tiled
    where tap_kh is input row 2*ho+kh-1 flattened (w-major, cin-minor).  The
    horizontal stride-2 / pad-1 taps are folded into M's block sparsity; the
    vertical pad row (tap0 at ho==0) is a zero row supplied by the kernel."""
    w = np.asarray(w_hwio, np.float32)          # (3, 3, Cin, Cout)
    Cin, Cout = w.shape[2], w.shape[3]
    Wo = W // 2
    WC = W * Cin
    M = np.zeros((3 * WC, Wo * Cout), np.float32)
    for kh in range(3):
        for kw in range(3):
            for wo in range(Wo):
                j = 2 * wo + kw - 1             # input column read by this tap
                if 0 <= j < W:
                    M[kh * WC + j * Cin: kh * WC + (j + 1) * Cin,
                      wo * Cout:(wo + 1) * Cout] = w[kh, kw]
    b_tiled = np.tile(np.asarray(b, np.float32), Wo).reshape(1, Wo * Cout)
    return M, b_tiled


def preprocess_params(params, imsize, z_dims, compute_dtype=jnp.bfloat16):
    """Build stacked per-layer matmul weights (pre-cast to compute_dtype) and
    fold the FC weight_gain + transpose.  Returns a pure-array pytree."""
    assert imsize & (imsize - 1) == 0, "imsize must be a power of two"
    H = W = imsize
    layers = []
    for (w, b) in params["convs"]:
        M, bt = _conv_to_stacked_matmul(w, b, H, W)
        layers.append((jnp.asarray(M, compute_dtype),
                       jnp.asarray(bt, jnp.float32)))
        H //= 2
        W //= 2
    assert H == 1 and W == 1
    w_fc, b_fc = params["fc"]
    w_fc_eff = (jnp.asarray(w_fc, jnp.float32) * (1.0 / math.sqrt(z_dims))).T
    w_fc_eff = w_fc_eff.astype(compute_dtype)            # (in, out), gain folded
    b_fc_eff = jnp.asarray(b_fc, jnp.float32).reshape(1, z_dims)
    return (layers, w_fc_eff, b_fc_eff)


# ----------------------------------------------------------------------------
# Kernel body.
# ----------------------------------------------------------------------------
def _mish(x):
    # mish(x) = x * tanh(softplus(x)); overflow-safe rational form with ONE exp
    # (EUP), an approximate reciprocal (EUP) and one Newton step (VPU, ~free):
    #   t = exp(-|x|)
    #   x >= 0: tanh(softplus(x)) = (1 + 2t) / (1 + 2t + 2t^2)
    #   x <  0: tanh(softplus(x)) = t(2 + t) / (2 + t(2 + t))
    t = jnp.exp(-jnp.abs(x))
    pos = x >= 0
    num = jnp.where(pos, 1.0 + 2.0 * t, t * (2.0 + t))
    den = jnp.where(pos, 1.0 + 2.0 * t + 2.0 * t * t, 2.0 + t * (2.0 + t))
    r = pl.reciprocal(den, approx=True)
    r = r * (2.0 - den * r)                     # Newton–Raphson -> ~f32 accuracy
    return x * num * r


def _make_kernel(n_layers):
    def kernel(*refs):
        x_ref = refs[0]
        fc_w_ref, fc_b_ref, o_ref = refs[-3], refs[-2], refs[-1]

        a = x_ref[...].astype(jnp.float32)          # (H, B, W*Cin)
        idx = 1
        for _ in range(n_layers):                   # static unroll over layers
            w_ref, b_ref = refs[idx], refs[idx + 1]
            idx += 2
            cdt = w_ref.dtype                       # pre-cast compute dtype
            H, B, WC = a.shape
            Ho = H // 2
            ac = a.astype(cdt)
            # Parity split of the rows (free leading-dim reshape; B=8 keeps
            # every row slice a whole sublane tile).
            a4 = ac.reshape(Ho, 2, B, WC)
            even = a4[:, 0]                         # input rows 2*ho     (kh=1)
            odd = a4[:, 1]                          # input rows 2*ho + 1 (kh=2)
            zrow = jnp.zeros((1, B, WC), cdt)       # top conv padding row
            if Ho > 1:                              # input rows 2*ho - 1 (kh=0)
                tap0 = jnp.concatenate([zrow, odd[:Ho - 1]], axis=0)
            else:
                tap0 = zrow
            # One fused matmul per layer: M = B*Ho rows, K = 3*W*Cin.
            operand = jnp.concatenate([tap0, even, odd], axis=-1)
            operand = operand.reshape(Ho * B, 3 * WC)
            acc = jnp.dot(operand, w_ref[...],
                          preferred_element_type=jnp.float32)   # (Ho*B, Wo*Cout)
            acc = acc + b_ref[...]                               # f32 bias add
            a = _mish(acc).reshape(Ho, B, acc.shape[-1])         # next layer input

        # After the conv stack: (1, B, z_dims) -> FC (gain pre-folded).
        z = a.reshape(a.shape[0] * a.shape[1], a.shape[2]).astype(fc_w_ref.dtype)
        out = jnp.dot(z, fc_w_ref[...],
                      preferred_element_type=jnp.float32) + fc_b_ref[...]
        o_ref[...] = out.astype(o_ref.dtype)
    return kernel


# ----------------------------------------------------------------------------
# Cost / VMEM bookkeeping.
# ----------------------------------------------------------------------------
def _cost_estimate(n_images, imsize, layers, z_dims, x_bytes):
    flops = 0
    trans = 0
    wbytes = 0
    for li, (M, bt) in enumerate(layers):
        Ho = imsize >> (li + 1)
        K, Nn = M.shape
        flops += 2 * Ho * K * Nn * n_images
        trans += 2 * Ho * Nn * n_images             # exp + recip per output elem
        wbytes += int(M.size) * M.dtype.itemsize + int(bt.size) * 4
    flops += 2 * z_dims * z_dims * n_images
    bytes_accessed = int(x_bytes) + int(wbytes) + n_images * z_dims * 4
    return pl.CostEstimate(flops=int(flops), transcendentals=int(trans),
                           bytes_accessed=int(bytes_accessed))


def _vmem_limit_bytes(imsize, layers, fc_w, fc_b, x_block_shape, b_tile, z_dims):
    wbytes = sum(int(M.size) * M.dtype.itemsize + int(bt.size) * bt.dtype.itemsize
                 for (M, bt) in layers)
    wbytes += int(fc_w.size) * fc_w.dtype.itemsize + int(fc_b.size) * fc_b.dtype.itemsize
    xbytes = int(np.prod(x_block_shape)) * 4
    obytes = b_tile * z_dims * 4
    actbytes = 0
    for li, (M, bt) in enumerate(layers):
        Ho = imsize >> (li + 1)
        K, Nn = M.shape
        actbytes += Ho * b_tile * (K * M.dtype.itemsize + Nn * 4)
    # 2x for BlockSpec double buffering, 2x activations for layout copies,
    # plus headroom for compiler-internal scratch.
    needed = 2 * (wbytes + xbytes + obytes) + 2 * actbytes + (4 << 20)
    try:
        cap = int(pltpu.get_tpu_info().vmem_capacity_bytes)
    except Exception:
        cap = 64 << 20                              # conservative (v7x) fallback
    cap = min(int(cap * 3 // 4), 96 << 20)
    return int(min(max(needed, 16 << 20), cap))


# ----------------------------------------------------------------------------
# Wrapper: one pallas_call for the whole module.
# ----------------------------------------------------------------------------
def featmap_to_latent(prep, x_nchw, *, b_tile=8):
    """prep = preprocess_params(...); x_nchw: (N, Cin, H, W) -> (N, z_dims)."""
    layers, fc_w, fc_b = prep
    N, Cin, H, W = x_nchw.shape
    z_dims = fc_w.shape[1]
    assert b_tile % 8 == 0, "b_tile must be a multiple of the 8-row sublane tile"
    n_pad = ((N + b_tile - 1) // b_tile) * b_tile

    # Lane-dense activation layout (H, batch, W*Cin): batch sits in the sublane
    # (matmul-M) dimension so one matmul serves all b_tile images per step.
    x = jnp.transpose(x_nchw, (2, 0, 3, 1)).reshape(H, N, W * Cin)
    if n_pad != N:
        x = jnp.pad(x, ((0, 0), (0, n_pad - N), (0, 0)))

    def const_spec(arr):                           # resident across grid steps
        zeros = (0,) * arr.ndim
        return pl.BlockSpec(arr.shape, lambda i, _z=zeros: _z)

    inputs = [x]
    in_specs = [pl.BlockSpec((H, b_tile, W * Cin), lambda i: (0, i, 0))]
    for (M, bt) in layers:
        inputs += [M, bt]
        in_specs += [const_spec(M), const_spec(bt)]
    inputs += [fc_w, fc_b]
    in_specs += [const_spec(fc_w), const_spec(fc_b)]

    out = pl.pallas_call(
        _make_kernel(len(layers)),
        grid=(n_pad // b_tile,),
        in_specs=in_specs,
        # z_dims < 128 lanes -> masked store, but it is one tiny store per
        # b_tile images (negligible).
        out_specs=pl.BlockSpec((b_tile, z_dims), lambda i: (i, 0)),
        out_shape=jax.ShapeDtypeStruct((n_pad, z_dims), jnp.float32),
        compiler_params=pltpu.CompilerParams(
            dimension_semantics=("parallel",),      # batch axis over TCs (v7x)
            vmem_limit_bytes=_vmem_limit_bytes(
                H, layers, fc_w, fc_b, (H, b_tile, W * Cin), b_tile, z_dims)),
        cost_estimate=_cost_estimate(n_pad, H, layers, z_dims, int(x.size) * 4),
    )(*inputs)
    return out[:N]


# ----------------------------------------------------------------------------
# Plain-JAX reference of the original module (correctness check).
# ----------------------------------------------------------------------------
def _mish_ref(x):
    return x * jnp.tanh(jnp.logaddexp(0.0, x))


def reference_forward(params, x_nchw, z_dims):
    x = jnp.transpose(x_nchw, (0, 2, 3, 1))          # NHWC
    for (w, b) in params["convs"]:
        x = lax.conv_general_dilated(
            x, w, window_strides=(2, 2), padding=((1, 1), (1, 1)),
            dimension_numbers=("NHWC", "HWIO", "NHWC"))
        x = _mish_ref(x + b)
    x = x.reshape(x.shape[0], z_dims)
    w_fc, b_fc = params["fc"]
    return x @ (w_fc * (1.0 / math.sqrt(z_dims))).T + b_fc


# ----------------------------------------------------------------------------
if __name__ == "__main__":
    imsize, nc_in, z_dims, batch = 16, 4, 32, 2
    key = jax.random.PRNGKey(0)
    kp, kx = jax.random.split(key)
    params = init_params(kp, imsize, nc_in, z_dims)
    x = jax.random.normal(kx, (batch, nc_in, imsize, imsize), jnp.float32)

    forward = jax.jit(featmap_to_latent, static_argnames=("b_tile",))
    ref = jax.block_until_ready(reference_forward(params, x, z_dims))

    # Exact-numerics run (f32 matmul operands) against the XLA reference.
    prep_f32 = preprocess_params(params, imsize, z_dims, compute_dtype=jnp.float32)
    out = jax.block_until_ready(forward(prep_f32, x))
    assert out.shape == (batch, z_dims), out.shape
    assert bool(jnp.all(jnp.isfinite(out)))
    err = float(jnp.max(jnp.abs(out - ref)))
    assert jnp.allclose(out, ref, rtol=2e-3, atol=2e-3), f"f32 max abs err {err}"

    # Performance-default run (bf16 matmul operands, f32 accumulation).
    prep_bf16 = preprocess_params(params, imsize, z_dims)   # bf16 default
    out_bf = jax.block_until_ready(forward(prep_bf16, x))
    assert out_bf.shape == (batch, z_dims), out_bf.shape
    assert bool(jnp.all(jnp.isfinite(out_bf)))
    err_bf = float(jnp.max(jnp.abs(out_bf - ref)))
    assert jnp.allclose(out_bf, ref, rtol=1e-1, atol=2e-1), f"bf16 max abs err {err_bf}"

    print("KERNEL_OK")
</pallas_src>

<mosaic_0001>
module attributes {stable_mosaic.version = 11 : i64} {
  func.func @kernel(%arg0: i32, %arg1: memref<16x8x64xf32, #tpu.memory_space<vmem>>, %arg2: memref<192x64xf32, #tpu.memory_space<vmem>>, %arg3: memref<1x64xf32, #tpu.memory_space<vmem>>, %arg4: memref<192x64xf32, #tpu.memory_space<vmem>>, %arg5: memref<1x64xf32, #tpu.memory_space<vmem>>, %arg6: memref<192x64xf32, #tpu.memory_space<vmem>>, %arg7: memref<1x64xf32, #tpu.memory_space<vmem>>, %arg8: memref<192x32xf32, #tpu.memory_space<vmem>>, %arg9: memref<1x32xf32, #tpu.memory_space<vmem>>, %arg10: memref<32x32xf32, #tpu.memory_space<vmem>>, %arg11: memref<1x32xf32, #tpu.memory_space<vmem>>, %arg12: memref<8x32xf32, #tpu.memory_space<vmem>>) attributes {dimension_semantics = [#tpu.dimension_semantics<parallel>], iteration_bounds = array<i64: 1>, scalar_prefetch = 0 : i64, scratch_operands = 0 : i64, tpu.core_type = #tpu.core_type<tc>, window_params = [{transform_indices = @transform_0, window_bounds = array<i64: 16, 8, 64>}, {pipeline_mode = #tpu.pipeline_mode<synchronous>, transform_indices = @transform_1, window_bounds = array<i64: 192, 64>}, {pipeline_mode = #tpu.pipeline_mode<synchronous>, transform_indices = @transform_2, window_bounds = array<i64: 1, 64>}, {pipeline_mode = #tpu.pipeline_mode<synchronous>, transform_indices = @transform_3, window_bounds = array<i64: 192, 64>}, {pipeline_mode = #tpu.pipeline_mode<synchronous>, transform_indices = @transform_4, window_bounds = array<i64: 1, 64>}, {pipeline_mode = #tpu.pipeline_mode<synchronous>, transform_indices = @transform_5, window_bounds = array<i64: 192, 64>}, {pipeline_mode = #tpu.pipeline_mode<synchronous>, transform_indices = @transform_6, window_bounds = array<i64: 1, 64>}, {pipeline_mode = #tpu.pipeline_mode<synchronous>, transform_indices = @transform_7, window_bounds = array<i64: 192, 32>}, {pipeline_mode = #tpu.pipeline_mode<synchronous>, transform_indices = @transform_8, window_bounds = array<i64: 1, 32>}, {pipeline_mode = #tpu.pipeline_mode<synchronous>, transform_indices = @transform_9, window_bounds = array<i64: 32, 32>}, {pipeline_mode = #tpu.pipeline_mode<synchronous>, transform_indices = @transform_10, window_bounds = array<i64: 1, 32>}, {transform_indices = @transform_11, window_bounds = array<i64: 8, 32>}]} {
    %c0 = arith.constant 0 : index
    %c0_0 = arith.constant 0 : index
    %c0_1 = arith.constant 0 : index
    %0 = vector.load %arg1[%c0, %c0_0, %c0_1] : memref<16x8x64xf32, #tpu.memory_space<vmem>>, vector<16x8x64xf32>
    %1 = vector.shape_cast %0 : vector<16x8x64xf32> to vector<8x2x8x64xf32>
    %2 = vector.extract_strided_slice %1 {offsets = [0, 0, 0, 0], sizes = [8, 1, 8, 64], strides = [1, 1, 1, 1]} : vector<8x2x8x64xf32> to vector<8x1x8x64xf32>
    %3 = vector.shape_cast %2 : vector<8x1x8x64xf32> to vector<8x8x64xf32>
    %4 = vector.extract_strided_slice %1 {offsets = [0, 1, 0, 0], sizes = [8, 1, 8, 64], strides = [1, 1, 1, 1]} : vector<8x2x8x64xf32> to vector<8x1x8x64xf32>
    %5 = vector.shape_cast %4 : vector<8x1x8x64xf32> to vector<8x8x64xf32>
    %cst = arith.constant 0.000000e+00 : f32
    %6 = vector.broadcast %cst : f32 to vector<1x8x64xf32>
    %7 = vector.extract_strided_slice %5 {offsets = [0, 0, 0], sizes = [7, 8, 64], strides = [1, 1, 1]} : vector<8x8x64xf32> to vector<7x8x64xf32>
    %8 = tpu.concatenate %6, %7 in 0 : vector<1x8x64xf32>, vector<7x8x64xf32> -> vector<8x8x64xf32>
    %9 = tpu.concatenate %8, %3, %5 in 2 : vector<8x8x64xf32>, vector<8x8x64xf32>, vector<8x8x64xf32> -> vector<8x8x192xf32>
    %10 = vector.shape_cast %9 : vector<8x8x192xf32> to vector<64x192xf32>
    %c0_2 = arith.constant 0 : index
    %c0_3 = arith.constant 0 : index
    %11 = vector.load %arg2[%c0_2, %c0_3] : memref<192x64xf32, #tpu.memory_space<vmem>>, vector<192x64xf32>
    %cst_4 = arith.constant dense<0.000000e+00> : vector<64x64xf32>
    %12 = tpu.matmul %10, %11, %cst_4 {dimension_numbers = #tpu.dot_dimension_numbers<[1], [0], [0], [1], [0, 0, 1, 1], [], []>} : vector<64x192xf32>, vector<192x64xf32>, vector<64x64xf32> -> vector<64x64xf32>
    %c0_5 = arith.constant 0 : index
    %c0_6 = arith.constant 0 : index
    %13 = vector.load %arg3[%c0_5, %c0_6] : memref<1x64xf32, #tpu.memory_space<vmem>>, vector<1x64xf32>
    %14 = vector.broadcast %13 : vector<1x64xf32> to vector<64x64xf32>
    %15 = arith.addf %12, %14 : vector<64x64xf32>
    %16 = math.absf %15 : vector<64x64xf32>
    %cst_7 = arith.constant 0.000000e+00 : f32
    %17 = vector.broadcast %cst_7 : f32 to vector<64x64xf32>
    %18 = arith.subf %17, %16 : vector<64x64xf32>
    %19 = math.exp %18 : vector<64x64xf32>
    %cst_8 = arith.constant 0.000000e+00 : f32
    %20 = vector.broadcast %cst_8 : f32 to vector<64x64xf32>
    %21 = arith.cmpf oge, %15, %20 : vector<64x64xf32>
    %cst_9 = arith.constant 2.000000e+00 : f32
    %22 = vector.broadcast %cst_9 : f32 to vector<64x64xf32>
    %23 = arith.mulf %22, %19 : vector<64x64xf32>
    %cst_10 = arith.constant 1.000000e+00 : f32
    %24 = vector.broadcast %cst_10 : f32 to vector<64x64xf32>
    %25 = arith.addf %24, %23 : vector<64x64xf32>
    %cst_11 = arith.constant 2.000000e+00 : f32
    %26 = vector.broadcast %cst_11 : f32 to vector<64x64xf32>
    %27 = arith.addf %26, %19 : vector<64x64xf32>
    %28 = arith.mulf %19, %27 : vector<64x64xf32>
    %29 = arith.select %21, %25, %28 : vector<64x64xi1>, vector<64x64xf32>
    %cst_12 = arith.constant 2.000000e+00 : f32
    %30 = vector.broadcast %cst_12 : f32 to vector<64x64xf32>
    %31 = arith.mulf %30, %19 : vector<64x64xf32>
    %cst_13 = arith.constant 1.000000e+00 : f32
    %32 = vector.broadcast %cst_13 : f32 to vector<64x64xf32>
    %33 = arith.addf %32, %31 : vector<64x64xf32>
    %cst_14 = arith.constant 2.000000e+00 : f32
    %34 = vector.broadcast %cst_14 : f32 to vector<64x64xf32>
    %35 = arith.mulf %34, %19 : vector<64x64xf32>
    %36 = arith.mulf %35, %19 : vector<64x64xf32>
    %37 = arith.addf %33, %36 : vector<64x64xf32>
    %cst_15 = arith.constant 2.000000e+00 : f32
    %38 = vector.broadcast %cst_15 : f32 to vector<64x64xf32>
    %39 = arith.addf %38, %19 : vector<64x64xf32>
    %40 = arith.mulf %19, %39 : vector<64x64xf32>
    %cst_16 = arith.constant 2.000000e+00 : f32
    %41 = vector.broadcast %cst_16 : f32 to vector<64x64xf32>
    %42 = arith.addf %41, %40 : vector<64x64xf32>
    %43 = arith.select %21, %37, %42 : vector<64x64xi1>, vector<64x64xf32>
    %44 = tpu.reciprocal %43 {approx = true} : vector<64x64xf32> -> vector<64x64xf32>
    %45 = arith.mulf %43, %44 : vector<64x64xf32>
    %cst_17 = arith.constant 2.000000e+00 : f32
    %46 = vector.broadcast %cst_17 : f32 to vector<64x64xf32>
    %47 = arith.subf %46, %45 : vector<64x64xf32>
    %48 = arith.mulf %44, %47 : vector<64x64xf32>
    %49 = arith.mulf %15, %29 : vector<64x64xf32>
    %50 = arith.mulf %49, %48 : vector<64x64xf32>
    %51 = vector.shape_cast %50 : vector<64x64xf32> to vector<8x8x64xf32>
    %52 = vector.shape_cast %51 : vector<8x8x64xf32> to vector<4x2x8x64xf32>
    %53 = vector.extract_strided_slice %52 {offsets = [0, 0, 0, 0], sizes = [4, 1, 8, 64], strides = [1, 1, 1, 1]} : vector<4x2x8x64xf32> to vector<4x1x8x64xf32>
    %54 = vector.shape_cast %53 : vector<4x1x8x64xf32> to vector<4x8x64xf32>
    %55 = vector.extract_strided_slice %52 {offsets = [0, 1, 0, 0], sizes = [4, 1, 8, 64], strides = [1, 1, 1, 1]} : vector<4x2x8x64xf32> to vector<4x1x8x64xf32>
    %56 = vector.shape_cast %55 : vector<4x1x8x64xf32> to vector<4x8x64xf32>
    %cst_18 = arith.constant 0.000000e+00 : f32
    %57 = vector.broadcast %cst_18 : f32 to vector<1x8x64xf32>
    %58 = vector.extract_strided_slice %56 {offsets = [0, 0, 0], sizes = [3, 8, 64], strides = [1, 1, 1]} : vector<4x8x64xf32> to vector<3x8x64xf32>
    %59 = tpu.concatenate %57, %58 in 0 : vector<1x8x64xf32>, vector<3x8x64xf32> -> vector<4x8x64xf32>
    %60 = tpu.concatenate %59, %54, %56 in 2 : vector<4x8x64xf32>, vector<4x8x64xf32>, vector<4x8x64xf32> -> vector<4x8x192xf32>
    %61 = vector.shape_cast %60 : vector<4x8x192xf32> to vector<32x192xf32>
    %c0_19 = arith.constant 0 : index
    %c0_20 = arith.constant 0 : index
    %62 = vector.load %arg4[%c0_19, %c0_20] : memref<192x64xf32, #tpu.memory_space<vmem>>, vector<192x64xf32>
    %cst_21 = arith.constant dense<0.000000e+00> : vector<32x64xf32>
    %63 = tpu.matmul %61, %62, %cst_21 {dimension_numbers = #tpu.dot_dimension_numbers<[1], [0], [0], [1], [0, 0, 1, 1], [], []>} : vector<32x192xf32>, vector<192x64xf32>, vector<32x64xf32> -> vector<32x64xf32>
    %c0_22 = arith.constant 0 : index
    %c0_23 = arith.constant 0 : index
    %64 = vector.load %arg5[%c0_22, %c0_23] : memref<1x64xf32, #tpu.memory_space<vmem>>, vector<1x64xf32>
    %65 = vector.broadcast %64 : vector<1x64xf32> to vector<32x64xf32>
    %66 = arith.addf %63, %65 : vector<32x64xf32>
    %67 = math.absf %66 : vector<32x64xf32>
    %cst_24 = arith.constant 0.000000e+00 : f32
    %68 = vector.broadcast %cst_24 : f32 to vector<32x64xf32>
    %69 = arith.subf %68, %67 : vector<32x64xf32>
    %70 = math.exp %69 : vector<32x64xf32>
    %cst_25 = arith.constant 0.000000e+00 : f32
    %71 = vector.broadcast %cst_25 : f32 to vector<32x64xf32>
    %72 = arith.cmpf oge, %66, %71 : vector<32x64xf32>
    %cst_26 = arith.constant 2.000000e+00 : f32
    %73 = vector.broadcast %cst_26 : f32 to vector<32x64xf32>
    %74 = arith.mulf %73, %70 : vector<32x64xf32>
    %cst_27 = arith.constant 1.000000e+00 : f32
    %75 = vector.broadcast %cst_27 : f32 to vector<32x64xf32>
    %76 = arith.addf %75, %74 : vector<32x64xf32>
    %cst_28 = arith.constant 2.000000e+00 : f32
    %77 = vector.broadcast %cst_28 : f32 to vector<32x64xf32>
    %78 = arith.addf %77, %70 : vector<32x64xf32>
    %79 = arith.mulf %70, %78 : vector<32x64xf32>
    %80 = arith.select %72, %76, %79 : vector<32x64xi1>, vector<32x64xf32>
    %cst_29 = arith.constant 2.000000e+00 : f32
    %81 = vector.broadcast %cst_29 : f32 to vector<32x64xf32>
    %82 = arith.mulf %81, %70 : vector<32x64xf32>
    %cst_30 = arith.constant 1.000000e+00 : f32
    %83 = vector.broadcast %cst_30 : f32 to vector<32x64xf32>
    %84 = arith.addf %83, %82 : vector<32x64xf32>
    %cst_31 = arith.constant 2.000000e+00 : f32
    %85 = vector.broadcast %cst_31 : f32 to vector<32x64xf32>
    %86 = arith.mulf %85, %70 : vector<32x64xf32>
    %87 = arith.mulf %86, %70 : vector<32x64xf32>
    %88 = arith.addf %84, %87 : vector<32x64xf32>
    %cst_32 = arith.constant 2.000000e+00 : f32
    %89 = vector.broadcast %cst_32 : f32 to vector<32x64xf32>
    %90 = arith.addf %89, %70 : vector<32x64xf32>
    %91 = arith.mulf %70, %90 : vector<32x64xf32>
    %cst_33 = arith.constant 2.000000e+00 : f32
    %92 = vector.broadcast %cst_33 : f32 to vector<32x64xf32>
    %93 = arith.addf %92, %91 : vector<32x64xf32>
    %94 = arith.select %72, %88, %93 : vector<32x64xi1>, vector<32x64xf32>
    %95 = tpu.reciprocal %94 {approx = true} : vector<32x64xf32> -> vector<32x64xf32>
    %96 = arith.mulf %94, %95 : vector<32x64xf32>
    %cst_34 = arith.constant 2.000000e+00 : f32
    %97 = vector.broadcast %cst_34 : f32 to vector<32x64xf32>
    %98 = arith.subf %97, %96 : vector<32x64xf32>
    %99 = arith.mulf %95, %98 : vector<32x64xf32>
    %100 = arith.mulf %66, %80 : vector<32x64xf32>
    %101 = arith.mulf %100, %99 : vector<32x64xf32>
    %102 = vector.shape_cast %101 : vector<32x64xf32> to vector<4x8x64xf32>
    %103 = vector.shape_cast %102 : vector<4x8x64xf32> to vector<2x2x8x64xf32>
    %104 = vector.extract_strided_slice %103 {offsets = [0, 0, 0, 0], sizes = [2, 1, 8, 64], strides = [1, 1, 1, 1]} : vector<2x2x8x64xf32> to vector<2x1x8x64xf32>
    %105 = vector.shape_cast %104 : vector<2x1x8x64xf32> to vector<2x8x64xf32>
    %106 = vector.extract_strided_slice %103 {offsets = [0, 1, 0, 0], sizes = [2, 1, 8, 64], strides = [1, 1, 1, 1]} : vector<2x2x8x64xf32> to vector<2x1x8x64xf32>
    %107 = vector.shape_cast %106 : vector<2x1x8x64xf32> to vector<2x8x64xf32>
    %cst_35 = arith.constant 0.000000e+00 : f32
    %108 = vector.broadcast %cst_35 : f32 to vector<1x8x64xf32>
    %109 = vector.extract_strided_slice %107 {offsets = [0, 0, 0], sizes = [1, 8, 64], strides = [1, 1, 1]} : vector<2x8x64xf32> to vector<1x8x64xf32>
    %110 = tpu.concatenate %108, %109 in 0 : vector<1x8x64xf32>, vector<1x8x64xf32> -> vector<2x8x64xf32>
    %111 = tpu.concatenate %110, %105, %107 in 2 : vector<2x8x64xf32>, vector<2x8x64xf32>, vector<2x8x64xf32> -> vector<2x8x192xf32>
    %112 = vector.shape_cast %111 : vector<2x8x192xf32> to vector<16x192xf32>
    %c0_36 = arith.constant 0 : index
    %c0_37 = arith.constant 0 : index
    %113 = vector.load %arg6[%c0_36, %c0_37] : memref<192x64xf32, #tpu.memory_space<vmem>>, vector<192x64xf32>
    %cst_38 = arith.constant dense<0.000000e+00> : vector<16x64xf32>
    %114 = tpu.matmul %112, %113, %cst_38 {dimension_numbers = #tpu.dot_dimension_numbers<[1], [0], [0], [1], [0, 0, 1, 1], [], []>} : vector<16x192xf32>, vector<192x64xf32>, vector<16x64xf32> -> vector<16x64xf32>
    %c0_39 = arith.constant 0 : index
    %c0_40 = arith.constant 0 : index
    %115 = vector.load %arg7[%c0_39, %c0_40] : memref<1x64xf32, #tpu.memory_space<vmem>>, vector<1x64xf32>
    %116 = vector.broadcast %115 : vector<1x64xf32> to vector<16x64xf32>
    %117 = arith.addf %114, %116 : vector<16x64xf32>
    %118 = math.absf %117 : vector<16x64xf32>
    %cst_41 = arith.constant 0.000000e+00 : f32
    %119 = vector.broadcast %cst_41 : f32 to vector<16x64xf32>
    %120 = arith.subf %119, %118 : vector<16x64xf32>
    %121 = math.exp %120 : vector<16x64xf32>
    %cst_42 = arith.constant 0.000000e+00 : f32
    %122 = vector.broadcast %cst_42 : f32 to vector<16x64xf32>
    %123 = arith.cmpf oge, %117, %122 : vector<16x64xf32>
    %cst_43 = arith.constant 2.000000e+00 : f32
    %124 = vector.broadcast %cst_43 : f32 to vector<16x64xf32>
    %125 = arith.mulf %124, %121 : vector<16x64xf32>
    %cst_44 = arith.constant 1.000000e+00 : f32
    %126 = vector.broadcast %cst_44 : f32 to vector<16x64xf32>
    %127 = arith.addf %126, %125 : vector<16x64xf32>
    %cst_45 = arith.constant 2.000000e+00 : f32
    %128 = vector.broadcast %cst_45 : f32 to vector<16x64xf32>
    %129 = arith.addf %128, %121 : vector<16x64xf32>
    %130 = arith.mulf %121, %129 : vector<16x64xf32>
    %131 = arith.select %123, %127, %130 : vector<16x64xi1>, vector<16x64xf32>
    %cst_46 = arith.constant 2.000000e+00 : f32
    %132 = vector.broadcast %cst_46 : f32 to vector<16x64xf32>
    %133 = arith.mulf %132, %121 : vector<16x64xf32>
    %cst_47 = arith.constant 1.000000e+00 : f32
    %134 = vector.broadcast %cst_47 : f32 to vector<16x64xf32>
    %135 = arith.addf %134, %133 : vector<16x64xf32>
    %cst_48 = arith.constant 2.000000e+00 : f32
    %136 = vector.broadcast %cst_48 : f32 to vector<16x64xf32>
    %137 = arith.mulf %136, %121 : vector<16x64xf32>
    %138 = arith.mulf %137, %121 : vector<16x64xf32>
    %139 = arith.addf %135, %138 : vector<16x64xf32>
    %cst_49 = arith.constant 2.000000e+00 : f32
    %140 = vector.broadcast %cst_49 : f32 to vector<16x64xf32>
    %141 = arith.addf %140, %121 : vector<16x64xf32>
    %142 = arith.mulf %121, %141 : vector<16x64xf32>
    %cst_50 = arith.constant 2.000000e+00 : f32
    %143 = vector.broadcast %cst_50 : f32 to vector<16x64xf32>
    %144 = arith.addf %143, %142 : vector<16x64xf32>
    %145 = arith.select %123, %139, %144 : vector<16x64xi1>, vector<16x64xf32>
    %146 = tpu.reciprocal %145 {approx = true} : vector<16x64xf32> -> vector<16x64xf32>
    %147 = arith.mulf %145, %146 : vector<16x64xf32>
    %cst_51 = arith.constant 2.000000e+00 : f32
    %148 = vector.broadcast %cst_51 : f32 to vector<16x64xf32>
    %149 = arith.subf %148, %147 : vector<16x64xf32>
    %150 = arith.mulf %146, %149 : vector<16x64xf32>
    %151 = arith.mulf %117, %131 : vector<16x64xf32>
    %152 = arith.mulf %151, %150 : vector<16x64xf32>
    %153 = vector.shape_cast %152 : vector<16x64xf32> to vector<2x8x64xf32>
    %154 = vector.shape_cast %153 : vector<2x8x64xf32> to vector<1x2x8x64xf32>
    %155 = vector.extract_strided_slice %154 {offsets = [0, 0, 0, 0], sizes = [1, 1, 8, 64], strides = [1, 1, 1, 1]} : vector<1x2x8x64xf32> to vector<1x1x8x64xf32>
    %156 = vector.shape_cast %155 : vector<1x1x8x64xf32> to vector<1x8x64xf32>
    %157 = vector.extract_strided_slice %154 {offsets = [0, 1, 0, 0], sizes = [1, 1, 8, 64], strides = [1, 1, 1, 1]} : vector<1x2x8x64xf32> to vector<1x1x8x64xf32>
    %158 = vector.shape_cast %157 : vector<1x1x8x64xf32> to vector<1x8x64xf32>
    %cst_52 = arith.constant 0.000000e+00 : f32
    %159 = vector.broadcast %cst_52 : f32 to vector<1x8x64xf32>
    %160 = tpu.concatenate %159, %156, %158 in 2 : vector<1x8x64xf32>, vector<1x8x64xf32>, vector<1x8x64xf32> -> vector<1x8x192xf32>
    %161 = vector.shape_cast %160 : vector<1x8x192xf32> to vector<8x192xf32>
    %c0_53 = arith.constant 0 : index
    %c0_54 = arith.constant 0 : index
    %162 = vector.load %arg8[%c0_53, %c0_54] : memref<192x32xf32, #tpu.memory_space<vmem>>, vector<192x32xf32>
    %cst_55 = arith.constant dense<0.000000e+00> : vector<8x32xf32>
    %163 = tpu.matmul %161, %162, %cst_55 {dimension_numbers = #tpu.dot_dimension_numbers<[1], [0], [0], [1], [0, 0, 1, 1], [], []>} : vector<8x192xf32>, vector<192x32xf32>, vector<8x32xf32> -> vector<8x32xf32>
    %c0_56 = arith.constant 0 : index
    %c0_57 = arith.constant 0 : index
    %164 = vector.load %arg9[%c0_56, %c0_57] : memref<1x32xf32, #tpu.memory_space<vmem>>, vector<1x32xf32>
    %165 = vector.broadcast %164 : vector<1x32xf32> to vector<8x32xf32>
    %166 = arith.addf %163, %165 : vector<8x32xf32>
    %167 = math.absf %166 : vector<8x32xf32>
    %cst_58 = arith.constant 0.000000e+00 : f32
    %168 = vector.broadcast %cst_58 : f32 to vector<8x32xf32>
    %169 = arith.subf %168, %167 : vector<8x32xf32>
    %170 = math.exp %169 : vector<8x32xf32>
    %cst_59 = arith.constant 0.000000e+00 : f32
    %171 = vector.broadcast %cst_59 : f32 to vector<8x32xf32>
    %172 = arith.cmpf oge, %166, %171 : vector<8x32xf32>
    %cst_60 = arith.constant 2.000000e+00 : f32
    %173 = vector.broadcast %cst_60 : f32 to vector<8x32xf32>
    %174 = arith.mulf %173, %170 : vector<8x32xf32>
    %cst_61 = arith.constant 1.000000e+00 : f32
    %175 = vector.broadcast %cst_61 : f32 to vector<8x32xf32>
    %176 = arith.addf %175, %174 : vector<8x32xf32>
    %cst_62 = arith.constant 2.000000e+00 : f32
    %177 = vector.broadcast %cst_62 : f32 to vector<8x32xf32>
    %178 = arith.addf %177, %170 : vector<8x32xf32>
    %179 = arith.mulf %170, %178 : vector<8x32xf32>
    %180 = arith.select %172, %176, %179 : vector<8x32xi1>, vector<8x32xf32>
    %cst_63 = arith.constant 2.000000e+00 : f32
    %181 = vector.broadcast %cst_63 : f32 to vector<8x32xf32>
    %182 = arith.mulf %181, %170 : vector<8x32xf32>
    %cst_64 = arith.constant 1.000000e+00 : f32
    %183 = vector.broadcast %cst_64 : f32 to vector<8x32xf32>
    %184 = arith.addf %183, %182 : vector<8x32xf32>
    %cst_65 = arith.constant 2.000000e+00 : f32
    %185 = vector.broadcast %cst_65 : f32 to vector<8x32xf32>
    %186 = arith.mulf %185, %170 : vector<8x32xf32>
    %187 = arith.mulf %186, %170 : vector<8x32xf32>
    %188 = arith.addf %184, %187 : vector<8x32xf32>
    %cst_66 = arith.constant 2.000000e+00 : f32
    %189 = vector.broadcast %cst_66 : f32 to vector<8x32xf32>
    %190 = arith.addf %189, %170 : vector<8x32xf32>
    %191 = arith.mulf %170, %190 : vector<8x32xf32>
    %cst_67 = arith.constant 2.000000e+00 : f32
    %192 = vector.broadcast %cst_67 : f32 to vector<8x32xf32>
    %193 = arith.addf %192, %191 : vector<8x32xf32>
    %194 = arith.select %172, %188, %193 : vector<8x32xi1>, vector<8x32xf32>
    %195 = tpu.reciprocal %194 {approx = true} : vector<8x32xf32> -> vector<8x32xf32>
    %196 = arith.mulf %194, %195 : vector<8x32xf32>
    %cst_68 = arith.constant 2.000000e+00 : f32
    %197 = vector.broadcast %cst_68 : f32 to vector<8x32xf32>
    %198 = arith.subf %197, %196 : vector<8x32xf32>
    %199 = arith.mulf %195, %198 : vector<8x32xf32>
    %200 = arith.mulf %166, %180 : vector<8x32xf32>
    %201 = arith.mulf %200, %199 : vector<8x32xf32>
    %202 = vector.shape_cast %201 : vector<8x32xf32> to vector<1x8x32xf32>
    %203 = vector.shape_cast %202 : vector<1x8x32xf32> to vector<8x32xf32>
    %c0_69 = arith.constant 0 : index
    %c0_70 = arith.constant 0 : index
    %204 = vector.load %arg10[%c0_69, %c0_70] : memref<32x32xf32, #tpu.memory_space<vmem>>, vector<32x32xf32>
    %cst_71 = arith.constant dense<0.000000e+00> : vector<8x32xf32>
    %205 = tpu.matmul %203, %204, %cst_71 {dimension_numbers = #tpu.dot_dimension_numbers<[1], [0], [0], [1], [0, 0, 1, 1], [], []>} : vector<8x32xf32>, vector<32x32xf32>, vector<8x32xf32> -> vector<8x32xf32>
    %c0_72 = arith.constant 0 : index
    %c0_73 = arith.constant 0 : index
    %206 = vector.load %arg11[%c0_72, %c0_73] : memref<1x32xf32, #tpu.memory_space<vmem>>, vector<1x32xf32>
    %207 = vector.broadcast %206 : vector<1x32xf32> to vector<8x32xf32>
    %208 = arith.addf %205, %207 : vector<8x32xf32>
    %c0_74 = arith.constant 0 : index
    %c0_75 = arith.constant 0 : index
    %209 = vector.load %arg12[%c0_74, %c0_75] : memref<8x32xf32, #tpu.memory_space<vmem>>, vector<8x32xf32>
    tpu.vector_store %arg12[%c0_74, %c0_75], %208 {strides = array<i32>} : memref<8x32xf32, #tpu.memory_space<vmem>>, vector<8x32xf32>,
    return
  }
  func.func @transform_0(%arg0: i32) -> (i32, i32, i32) {
    %c0_i32 = arith.constant 0 : i32
    %c0_i32_0 = arith.constant 0 : i32
    %c0_i32_1 = arith.constant 0 : i32
    return %c0_i32, %arg0, %c0_i32_0 : i32, i32, i32
  }
  func.func @transform_1(%arg0: i32) -> (i32, i32) {
    %c0_i32 = arith.constant 0 : i32
    %c0_i32_0 = arith.constant 0 : i32
    %c0_i32_1 = arith.constant 0 : i32
    return %c0_i32, %c0_i32_0 : i32, i32
  }
  func.func @transform_2(%arg0: i32) -> (i32, i32) {
    %c0_i32 = arith.constant 0 : i32
    %c0_i32_0 = arith.constant 0 : i32
    %c0_i32_1 = arith.constant 0 : i32
    return %c0_i32, %c0_i32_0 : i32, i32
  }
  func.func @transform_3(%arg0: i32) -> (i32, i32) {
    %c0_i32 = arith.constant 0 : i32
    %c0_i32_0 = arith.constant 0 : i32
    %c0_i32_1 = arith.constant 0 : i32
    return %c0_i32, %c0_i32_0 : i32, i32
  }
  func.func @transform_4(%arg0: i32) -> (i32, i32) {
    %c0_i32 = arith.constant 0 : i32
    %c0_i32_0 = arith.constant 0 : i32
    %c0_i32_1 = arith.constant 0 : i32
    return %c0_i32, %c0_i32_0 : i32, i32
  }
  func.func @transform_5(%arg0: i32) -> (i32, i32) {
    %c0_i32 = arith.constant 0 : i32
    %c0_i32_0 = arith.constant 0 : i32
    %c0_i32_1 = arith.constant 0 : i32
    return %c0_i32, %c0_i32_0 : i32, i32
  }
  func.func @transform_6(%arg0: i32) -> (i32, i32) {
    %c0_i32 = arith.constant 0 : i32
    %c0_i32_0 = arith.constant 0 : i32
    %c0_i32_1 = arith.constant 0 : i32
    return %c0_i32, %c0_i32_0 : i32, i32
  }
  func.func @transform_7(%arg0: i32) -> (i32, i32) {
    %c0_i32 = arith.constant 0 : i32
    %c0_i32_0 = arith.constant 0 : i32
    %c0_i32_1 = arith.constant 0 : i32
    return %c0_i32, %c0_i32_0 : i32, i32
  }
  func.func @transform_8(%arg0: i32) -> (i32, i32) {
    %c0_i32 = arith.constant 0 : i32
    %c0_i32_0 = arith.constant 0 : i32
    %c0_i32_1 = arith.constant 0 : i32
    return %c0_i32, %c0_i32_0 : i32, i32
  }
  func.func @transform_9(%arg0: i32) -> (i32, i32) {
    %c0_i32 = arith.constant 0 : i32
    %c0_i32_0 = arith.constant 0 : i32
    %c0_i32_1 = arith.constant 0 : i32
    return %c0_i32, %c0_i32_0 : i32, i32
  }
  func.func @transform_10(%arg0: i32) -> (i32, i32) {
    %c0_i32 = arith.constant 0 : i32
    %c0_i32_0 = arith.constant 0 : i32
    %c0_i32_1 = arith.constant 0 : i32
    return %c0_i32, %c0_i32_0 : i32, i32
  }
  func.func @transform_11(%arg0: i32) -> (i32, i32) {
    %c0_i32 = arith.constant 0 : i32
    %c0_i32_0 = arith.constant 0 : i32
    return %arg0, %c0_i32 : i32, i32
  }
}

</mosaic_0001>

<llo_original>
// kernel: featmap_to_latent.1
$region0: #{featmap_to_latent.1}
  #allocation0 [shape = 'u32[]', space=smem, size = 0x4, offset = 0x4, fixed_abs, tag = 'smem constant byte address 0x4 - core index']
  #allocation1 [shape = 'u32[144,128]{1,0:T(1,128)}', space=vmem, size = 0x12000, scoped, tag = 'internal scratch']
  %s0 = inlined_call_operand.vmem [shape: f32[16,8,64], index: 0, kind: input, shape index: {}]
  %s1 = inlined_call_operand.vmem [shape: f32[192,64], index: 1, kind: input, shape index: {}]
  %s2 = inlined_call_operand.vmem [shape: f32[1,64], index: 2, kind: input, shape index: {}]
  %s3 = inlined_call_operand.vmem [shape: f32[192,64], index: 3, kind: input, shape index: {}]
  %s4 = inlined_call_operand.vmem [shape: f32[1,64], index: 4, kind: input, shape index: {}]
  %s5 = inlined_call_operand.vmem [shape: f32[192,64], index: 5, kind: input, shape index: {}]
  %s6 = inlined_call_operand.vmem [shape: f32[1,64], index: 6, kind: input, shape index: {}]
  %s7 = inlined_call_operand.vmem [shape: f32[192,32], index: 7, kind: input, shape index: {}]
  %s8 = inlined_call_operand.vmem [shape: f32[1,32], index: 8, kind: input, shape index: {}]
  %s9 = inlined_call_operand.vmem [shape: f32[32,32], index: 9, kind: input, shape index: {}]
  %s10 = inlined_call_operand.vmem [shape: f32[1,32], index: 10, kind: input, shape index: {}]
  %s11 = inlined_call_operand.vmem [shape: f32[8,32], index: 11, kind: output, shape index: {}]
  %s12 = sld [smem:[#allocation0]]
  $region54: #{featmap_to_latent.1} parent=0
    _
  %s14 = ssub.s32 1, %s12
  %s15 = scalar_select 0, %s14, %s12
  // Predicated region
  $region2: #{featmap_to_latent.1} parent=0 // pred_check
    _
  $region3: #{featmap_to_latent.1} parent=0 // pred_check_branch
    %17 = sbr.rel (0) target = $region5
  $region4: #{featmap_to_latent.1} parent=0 // pred_region
    _
  $region5: #{featmap_to_latent.1} parent=0 // pred_fallthru
    _
  // Predicated region
  $region6: #{featmap_to_latent.1} parent=0 // pred_check
    _
  $region7: #{featmap_to_latent.1} parent=0 // pred_check_branch
    %19 = sbr.rel (0) target = $region9
  $region8: #{featmap_to_latent.1} parent=0 // pred_region
    _
  $region9: #{featmap_to_latent.1} parent=0 // pred_fallthru
    _
  // Predicated region
  $region10: #{featmap_to_latent.1} parent=0 // pred_check
    _
  $region11: #{featmap_to_latent.1} parent=0 // pred_check_branch
    %21 = sbr.rel (0) target = $region13
  $region12: #{featmap_to_latent.1} parent=0 // pred_region
    _
  $region13: #{featmap_to_latent.1} parent=0 // pred_fallthru
    _
  // Predicated region
  $region14: #{featmap_to_latent.1} parent=0 // pred_check
    _
  $region15: #{featmap_to_latent.1} parent=0 // pred_check_branch
    %23 = sbr.rel (0) target = $region17
  $region16: #{featmap_to_latent.1} parent=0 // pred_region
    _
  $region17: #{featmap_to_latent.1} parent=0 // pred_fallthru
    _
  // Predicated region
  $region18: #{featmap_to_latent.1} parent=0 // pred_check
    _
  $region19: #{featmap_to_latent.1} parent=0 // pred_check_branch
    %25 = sbr.rel (0) target = $region21
  $region20: #{featmap_to_latent.1} parent=0 // pred_region
    _
  $region21: #{featmap_to_latent.1} parent=0 // pred_fallthru
    _
  // Predicated region
  $region22: #{featmap_to_latent.1} parent=0 // pred_check
    _
  $region23: #{featmap_to_latent.1} parent=0 // pred_check_branch
    %27 = sbr.rel (0) target = $region25
  $region24: #{featmap_to_latent.1} parent=0 // pred_region
    _
  $region25: #{featmap_to_latent.1} parent=0 // pred_fallthru
    _
  // Predicated region
  $region26: #{featmap_to_latent.1} parent=0 // pred_check
    _
  $region27: #{featmap_to_latent.1} parent=0 // pred_check_branch
    %29 = sbr.rel (0) target = $region29
  $region28: #{featmap_to_latent.1} parent=0 // pred_region
    _
  $region29: #{featmap_to_latent.1} parent=0 // pred_fallthru
    _
  // Predicated region
  $region30: #{featmap_to_latent.1} parent=0 // pred_check
    _
  $region31: #{featmap_to_latent.1} parent=0 // pred_check_branch
    %31 = sbr.rel (0) target = $region33
  $region32: #{featmap_to_latent.1} parent=0 // pred_region
    _
  $region33: #{featmap_to_latent.1} parent=0 // pred_fallthru
    _
  // Predicated region
  $region34: #{featmap_to_latent.1} parent=0 // pred_check
    _
  $region35: #{featmap_to_latent.1} parent=0 // pred_check_branch
    %33 = sbr.rel (0) target = $region37
  $region36: #{featmap_to_latent.1} parent=0 // pred_region
    _
  $region37: #{featmap_to_latent.1} parent=0 // pred_fallthru
    _
  // Predicated region
  $region38: #{featmap_to_latent.1} parent=0 // pred_check
    _
  $region39: #{featmap_to_latent.1} parent=0 // pred_check_branch
    %35 = sbr.rel (0) target = $region41
  $region40: #{featmap_to_latent.1} parent=0 // pred_region
    _
  $region41: #{featmap_to_latent.1} parent=0 // pred_fallthru
    _
  // Predicated region
  $region42: #{featmap_to_latent.1} parent=0 // pred_check
    _
  $region43: #{featmap_to_latent.1} parent=0 // pred_check_branch
    %37 = sbr.rel (0) target = $region45
  $region44: #{featmap_to_latent.1} parent=0 // pred_region
    _
  $region45: #{featmap_to_latent.1} parent=0 // pred_fallthru
    _
  %v38 = vld [vmem:[%s0] sm:$0xff]
  %v39 = vld [vmem:[%s0 + $0x8] sm:$0xff]
  %v40 = vld [vmem:[%s0 + $0x10] sm:$0xff]
  %v41 = vld [vmem:[%s0 + $0x18] sm:$0xff]
  %v42 = vld [vmem:[%s0 + $0x20] sm:$0xff]
  %v43 = vld [vmem:[%s0 + $0x28] sm:$0xff]
  %v44 = vld [vmem:[%s0 + $0x30] sm:$0xff]
  %v45 = vld [vmem:[%s0 + $0x38] sm:$0xff]
  %v46 = vld [vmem:[%s0 + $0x40] sm:$0xff]
  %v47 = vld [vmem:[%s0 + $0x48] sm:$0xff]
  %v48 = vld [vmem:[%s0 + $0x50] sm:$0xff]
  %v49 = vld [vmem:[%s0 + $0x58] sm:$0xff]
  %v50 = vld [vmem:[%s0 + $0x60] sm:$0xff]
  %v51 = vld [vmem:[%s0 + $0x68] sm:$0xff]
  %v52 = vld [vmem:[%s0 + $0x70] sm:$0xff]
  %v53 = vld [vmem:[%s0 + $0x78] sm:$0xff]
  %62 = vrot.lane.b32.xlu0 %v38, 64
  %v63 = vpop.permute.xlu0 %62
  %64 = vrot.lane.b32.xlu0 %v40, 64
  %v65 = vpop.permute.xlu0 %64
  %66 = vrot.lane.b32.xlu0 %v42, 64
  %v67 = vpop.permute.xlu0 %66
  %68 = vrot.lane.b32.xlu0 %v44, 64
  %v69 = vpop.permute.xlu0 %68
  %70 = vrot.lane.b32.xlu0 %v46, 64
  %v71 = vpop.permute.xlu0 %70
  %72 = vrot.lane.b32.xlu0 %v48, 64
  %v73 = vpop.permute.xlu0 %72
  %74 = vrot.lane.b32.xlu0 %v50, 64
  %v75 = vpop.permute.xlu0 %74
  %76 = vrot.lane.b32.xlu0 %v52, 64
  %v77 = vpop.permute.xlu0 %76
  %vm86 = vcmask 523264
  %v87 = vsel %vm86, 0.0, %v63
  %v88 = vsel %vm86, %v39, %v65
  %v89 = vsel %vm86, %v41, %v67
  %v90 = vsel %vm86, %v43, %v69
  %v91 = vsel %vm86, %v45, %v71
  %v92 = vsel %vm86, %v47, %v73
  %v93 = vsel %vm86, %v49, %v75
  %v94 = vsel %vm86, %v51, %v77
  %v95 = vld [vmem:[%s1] sm:$0xff]
  %v96 = vld [vmem:[%s1 + $0x8] sm:$0xff]
  %v97 = vld [vmem:[%s1 + $0x10] sm:$0xff]
  %v98 = vld [vmem:[%s1 + $0x18] sm:$0xff]
  %v99 = vld [vmem:[%s1 + $0x20] sm:$0xff]
  %v100 = vld [vmem:[%s1 + $0x28] sm:$0xff]
  %v101 = vld [vmem:[%s1 + $0x30] sm:$0xff]
  %v102 = vld [vmem:[%s1 + $0x38] sm:$0xff]
  %v103 = vld [vmem:[%s1 + $0x40] sm:$0xff]
  %v104 = vld [vmem:[%s1 + $0x48] sm:$0xff]
  %v105 = vld [vmem:[%s1 + $0x50] sm:$0xff]
  %v106 = vld [vmem:[%s1 + $0x58] sm:$0xff]
  %v107 = vld [vmem:[%s1 + $0x60] sm:$0xff]
  %v108 = vld [vmem:[%s1 + $0x68] sm:$0xff]
  %v109 = vld [vmem:[%s1 + $0x70] sm:$0xff]
  %v110 = vld [vmem:[%s1 + $0x78] sm:$0xff]
  %v111 = vld [vmem:[%s1 + $0x80] sm:$0xff]
  %v112 = vld [vmem:[%s1 + $0x88] sm:$0xff]
  %v113 = vld [vmem:[%s1 + $0x90] sm:$0xff]
  %v114 = vld [vmem:[%s1 + $0x98] sm:$0xff]
  %v115 = vld [vmem:[%s1 + $0xa0] sm:$0xff]
  %v116 = vld [vmem:[%s1 + $0xa8] sm:$0xff]
  %v117 = vld [vmem:[%s1 + $0xb0] sm:$0xff]
  %v118 = vld [vmem:[%s1 + $0xb8] sm:$0xff]
  %v119 = vld [vmem:[%s2] sm:$0x1]
  %v121 = vlaneseq
  %v122 = vshrl.u32 %v121, 7
  %v123 = vsub.s32 0, %v122
  %v124 = vrot.slane %v119, %v123
  %v127 = vsel %vm86, %v39, 0
  %v130 = vsel %vm86, %v41, 0
  %v133 = vsel %vm86, %v43, 0
  %v136 = vsel %vm86, %v45, 0
  %v139 = vsel %vm86, %v47, 0
  %v142 = vsel %vm86, %v49, 0
  %v145 = vsel %vm86, %v51, 0
  %v148 = vsel %vm86, %v53, 0
  %150 = vmatprep.subr.mxu0 0.0
  %151 = vmatpush1.msra.mxu0 %v95
  %152 = vmatprep.subr.mxu0 0.0
  %153 = vmatpush1.msra.mxu0 %v96
  %154 = vmatprep.subr.mxu0 0.0
  %155 = vmatpush1.msra.mxu0 %v97
  %156 = vmatprep.subr.mxu0 0.0
  %157 = vmatpush1.msra.mxu0 %v98
  %158 = vmatprep.subr.mxu0 0.0
  %159 = vmatpush1.msra.mxu0 %v99
  %160 = vmatprep.subr.mxu0 0.0
  %161 = vmatpush1.msra.mxu0 %v100
  %162 = vmatprep.subr.mxu0 0.0
  %163 = vmatpush1.msra.mxu0 %v101
  %164 = vmatprep.subr.mxu0 0.0
  %165 = vmatpush1.msra.mxu0 %v102
  %166 = vmatprep.subr.mxu0 0.0
  %167 = vmatpush1.msra.mxu0 %v103
  %168 = vmatprep.subr.mxu0 0.0
  %169 = vmatpush1.msra.mxu0 %v104
  %170 = vmatprep.subr.mxu0 0.0
  %171 = vmatpush1.msra.mxu0 %v105
  %172 = vmatprep.subr.mxu0 0.0
  %173 = vmatpush1.msra.mxu0 %v106
  %174 = vmatprep.subr.mxu0 0.0
  %175 = vmatpush1.msra.mxu0 %v107
  %176 = vmatprep.subr.mxu0 0.0
  %177 = vmatpush1.msra.mxu0 %v108
  %178 = vmatprep.subr.mxu0 0.0
  %179 = vmatpush1.msra.mxu0 %v109
  %180 = vmatprep.subr.mxu0 0.0
  %181 = vmatpush1.msra.mxu0 %v110
  %182 = vmatprep.subr.mxu0 0.0
  %183 = vmatpush1.msra.mxu0 %v111
  %184 = vmatprep.subr.mxu0 0.0
  %185 = vmatpush1.msra.mxu0 %v112
  %186 = vmatprep.subr.mxu0 0.0
  %187 = vmatpush1.msra.mxu0 %v113
  %188 = vmatprep.subr.mxu0 0.0
  %189 = vmatpush1.msra.mxu0 %v114
  %190 = vmatprep.subr.mxu0 0.0
  %191 = vmatpush1.msra.mxu0 %v115
  %192 = vmatprep.subr.mxu0 0.0
  %193 = vmatpush1.msra.mxu0 %v116
  %194 = vmatprep.subr.mxu0 0.0
  %195 = vmatpush1.msra.mxu0 %v117
  %196 = vmatprep.subr.mxu0 0.0
  %197 = vmatpush1.msra.mxu0 %v118
  %198 = vmatprep.subr.mxu0 0.0
  %199 = vmatpush1.msra.mxu0 0.0
  %200 = vmatprep.subr.mxu0 0.0
  %201 = vmatpush1.msra.mxu0 0.0
  %202 = vmatprep.subr.mxu0 0.0
  %203 = vmatpush1.msra.mxu0 0.0
  %204 = vmatprep.subr.mxu0 0.0
  %205 = vmatpush1.msra.mxu0 0.0
  %206 = vmatprep.subr.mxu0 0.0
  %207 = vmatpush1.msra.mxu0 0.0
  %208 = vmatprep.subr.mxu0 0.0
  %209 = vmatpush1.msra.mxu0 0.0
  %210 = vmatprep.subr.mxu0 0.0
  %211 = vmatpush1.msra.mxu0 0.0
  %212 = vmatprep.subr.mxu0 0.0
  %213 = vmatpush1.msra.mxu0 0.0
  %214 = vmatprep.mubr.f32.mxu0 %v127
  %215 = vmatmul.mubr.f32.gmra.mrb[0].mxu0 %v87
  %v216 = vpop.f32.mrb[0].mxu0
  %v217 = vadd.f32 %v124, %v216
  %v218 = vpop.f32.mrb[0].mxu0
  %219 = vmatprep.mubr.f32.mxu0 %v130
  %220 = vmatmul.mubr.f32.gmra.mrb[0].mxu0 %v88
  %v221 = vpop.f32.mrb[0].mxu0
  %v222 = vadd.f32 %v124, %v221
  %v223 = vpop.f32.mrb[0].mxu0
  %224 = vmatprep.mubr.f32.mxu0 %v133
  %225 = vmatmul.mubr.f32.gmra.mrb[0].mxu0 %v89
  %v226 = vpop.f32.mrb[0].mxu0
  %v227 = vadd.f32 %v124, %v226
  %v228 = vpop.f32.mrb[0].mxu0
  %229 = vmatprep.mubr.f32.mxu0 %v136
  %230 = vmatmul.mubr.f32.gmra.mrb[0].mxu0 %v90
  %v231 = vpop.f32.mrb[0].mxu0
  %v232 = vadd.f32 %v124, %v231
  %v233 = vpop.f32.mrb[0].mxu0
  %234 = vmatprep.mubr.f32.mxu0 %v139
  %235 = vmatmul.mubr.f32.gmra.mrb[0].mxu0 %v91
  %v236 = vpop.f32.mrb[0].mxu0
  %v237 = vadd.f32 %v124, %v236
  %v238 = vpop.f32.mrb[0].mxu0
  %239 = vmatprep.mubr.f32.mxu0 %v142
  %240 = vmatmul.mubr.f32.gmra.mrb[0].mxu0 %v92
  %v241 = vpop.f32.mrb[0].mxu0
  %v242 = vadd.f32 %v124, %v241
  %v243 = vpop.f32.mrb[0].mxu0
  %244 = vmatprep.mubr.f32.mxu0 %v145
  %245 = vmatmul.mubr.f32.gmra.mrb[0].mxu0 %v93
  %v246 = vpop.f32.mrb[0].mxu0
  %v247 = vadd.f32 %v124, %v246
  %v248 = vpop.f32.mrb[0].mxu0
  %249 = vmatprep.mubr.f32.mxu0 %v148
  %250 = vmatmul.mubr.f32.gmra.mrb[0].mxu0 %v94
  %v251 = vpop.f32.mrb[0].mxu0
  %v252 = vadd.f32 %v124, %v251
  %v253 = vpop.f32.mrb[0].mxu0
  %254 = vdwg.mxu0
  %v255 = vand.u32 2147483647, %v217
  %v256 = vand.u32 2147483647, %v222
  %v257 = vand.u32 2147483647, %v227
  %v258 = vand.u32 2147483647, %v232
  %v259 = vand.u32 2147483647, %v237
  %v260 = vand.u32 2147483647, %v242
  %v261 = vand.u32 2147483647, %v247
  %v262 = vand.u32 2147483647, %v252
  %v263 = vsub.f32 0.0, %v255
  %v264 = vsub.f32 0.0, %v256
  %v265 = vsub.f32 0.0, %v257
  %v266 = vsub.f32 0.0, %v258
  %v267 = vsub.f32 0.0, %v259
  %v268 = vsub.f32 0.0, %v260
  %v269 = vsub.f32 0.0, %v261
  %v270 = vsub.f32 0.0, %v262
  %v271 = vmul.f32 %v263, 1.442695
  %v272 = vpow.pop %v271
  %v273 = vmul.f32 %v264, 1.442695
  %v274 = vpow.pop %v273
  %v275 = vmul.f32 %v265, 1.442695
  %v276 = vpow.pop %v275
  %v277 = vmul.f32 %v266, 1.442695
  %v278 = vpow.pop %v277
  %v279 = vmul.f32 %v267, 1.442695
  %v280 = vpow.pop %v279
  %v281 = vmul.f32 %v268, 1.442695
  %v282 = vpow.pop %v281
  %v283 = vmul.f32 %v269, 1.442695
  %v284 = vpow.pop %v283
  %v285 = vmul.f32 %v270, 1.442695
  %v286 = vpow.pop %v285
  %vm287 = vcmp.ge.f32.partialorder %v217, 0.0
  %vm288 = vcmp.ge.f32.partialorder %v222, 0.0
  %vm289 = vcmp.ge.f32.partialorder %v227, 0.0
  %vm290 = vcmp.ge.f32.partialorder %v232, 0.0
  %vm291 = vcmp.ge.f32.partialorder %v237, 0.0
  %vm292 = vcmp.ge.f32.partialorder %v242, 0.0
  %vm293 = vcmp.ge.f32.partialorder %v247, 0.0
  %vm294 = vcmp.ge.f32.partialorder %v252, 0.0
  %v295 = vmul.f32 %v272, 2.0
  %v296 = vmul.f32 %v274, 2.0
  %v297 = vmul.f32 %v276, 2.0
  %v298 = vmul.f32 %v278, 2.0
  %v299 = vmul.f32 %v280, 2.0
  %v300 = vmul.f32 %v282, 2.0
  %v301 = vmul.f32 %v284, 2.0
  %v302 = vmul.f32 %v286, 2.0
  %v303 = vadd.f32 %v295, 1.0
  %v304 = vadd.f32 %v296, 1.0
  %v305 = vadd.f32 %v297, 1.0
  %v306 = vadd.f32 %v298, 1.0
  %v307 = vadd.f32 %v299, 1.0
  %v308 = vadd.f32 %v300, 1.0
  %v309 = vadd.f32 %v301, 1.0
  %v310 = vadd.f32 %v302, 1.0
  %v311 = vadd.f32 %v272, 2.0
  %v312 = vadd.f32 %v274, 2.0
  %v313 = vadd.f32 %v276, 2.0
  %v314 = vadd.f32 %v278, 2.0
  %v315 = vadd.f32 %v280, 2.0
  %v316 = vadd.f32 %v282, 2.0
  %v317 = vadd.f32 %v284, 2.0
  %v318 = vadd.f32 %v286, 2.0
  %v319 = vmul.f32 %v272, %v311
  %v320 = vmul.f32 %v274, %v312
  %v321 = vmul.f32 %v276, %v313
  %v322 = vmul.f32 %v278, %v314
  %v323 = vmul.f32 %v280, %v315
  %v324 = vmul.f32 %v282, %v316
  %v325 = vmul.f32 %v284, %v317
  %v326 = vmul.f32 %v286, %v318
  %v327 = vsel %vm287, %v303, %v319
  %v328 = vsel %vm288, %v304, %v320
  %v329 = vsel %vm289, %v305, %v321
  %v330 = vsel %vm290, %v306, %v322
  %v331 = vsel %vm291, %v307, %v323
  %v332 = vsel %vm292, %v308, %v324
  %v333 = vsel %vm293, %v309, %v325
  %v334 = vsel %vm294, %v310, %v326
  %v335 = vmul.f32 %v295, %v272
  %v336 = vmul.f32 %v296, %v274
  %v337 = vmul.f32 %v297, %v276
  %v338 = vmul.f32 %v298, %v278
  %v339 = vmul.f32 %v299, %v280
  %v340 = vmul.f32 %v300, %v282
  %v341 = vmul.f32 %v301, %v284
  %v342 = vmul.f32 %v302, %v286
  %v343 = vadd.f32 %v303, %v335
  %v344 = vadd.f32 %v304, %v336
  %v345 = vadd.f32 %v305, %v337
  %v346 = vadd.f32 %v306, %v338
  %v347 = vadd.f32 %v307, %v339
  %v348 = vadd.f32 %v308, %v340
  %v349 = vadd.f32 %v309, %v341
  %v350 = vadd.f32 %v310, %v342
  %v351 = vadd.f32 %v319, 2.0
  %v352 = vadd.f32 %v320, 2.0
  %v353 = vadd.f32 %v321, 2.0
  %v354 = vadd.f32 %v322, 2.0
  %v355 = vadd.f32 %v323, 2.0
  %v356 = vadd.f32 %v324, 2.0
  %v357 = vadd.f32 %v325, 2.0
  %v358 = vadd.f32 %v326, 2.0
  %v359 = vsel %vm287, %v343, %v351
  %v360 = vsel %vm288, %v344, %v352
  %v361 = vsel %vm289, %v345, %v353
  %v362 = vsel %vm290, %v346, %v354
  %v363 = vsel %vm291, %v347, %v355
  %v364 = vsel %vm292, %v348, %v356
  %v365 = vsel %vm293, %v349, %v357
  %v366 = vsel %vm294, %v350, %v358
  %v367 = vrcp.pop %v359
  %v368 = vrcp.pop %v360
  %v369 = vrcp.pop %v361
  %v370 = vrcp.pop %v362
  %v371 = vrcp.pop %v363
  %v372 = vrcp.pop %v364
  %v373 = vrcp.pop %v365
  %v374 = vrcp.pop %v366
  %v375 = vmul.f32 %v359, %v367
  %v376 = vmul.f32 %v360, %v368
  %v377 = vmul.f32 %v361, %v369
  %v378 = vmul.f32 %v362, %v370
  %v379 = vmul.f32 %v363, %v371
  %v380 = vmul.f32 %v364, %v372
  %v381 = vmul.f32 %v365, %v373
  %v382 = vmul.f32 %v366, %v374
  %v383 = vsub.f32 2.0, %v375
  %v384 = vsub.f32 2.0, %v376
  %v385 = vsub.f32 2.0, %v377
  %v386 = vsub.f32 2.0, %v378
  %v387 = vsub.f32 2.0, %v379
  %v388 = vsub.f32 2.0, %v380
  %v389 = vsub.f32 2.0, %v381
  %v390 = vsub.f32 2.0, %v382
  %v391 = vmul.f32 %v367, %v383
  %v392 = vmul.f32 %v368, %v384
  %v393 = vmul.f32 %v369, %v385
  %v394 = vmul.f32 %v370, %v386
  %v395 = vmul.f32 %v371, %v387
  %v396 = vmul.f32 %v372, %v388
  %v397 = vmul.f32 %v373, %v389
  %v398 = vmul.f32 %v374, %v390
  %v399 = vmul.f32 %v217, %v327
  %v400 = vmul.f32 %v222, %v328
  %v401 = vmul.f32 %v227, %v329
  %v402 = vmul.f32 %v232, %v330
  %v403 = vmul.f32 %v237, %v331
  %v404 = vmul.f32 %v242, %v332
  %v405 = vmul.f32 %v247, %v333
  %v406 = vmul.f32 %v252, %v334
  %v407 = vmul.f32 %v399, %v391
  %v408 = vmul.f32 %v400, %v392
  %v409 = vmul.f32 %v401, %v393
  %v410 = vmul.f32 %v402, %v394
  %v411 = vmul.f32 %v403, %v395
  %v412 = vmul.f32 %v404, %v396
  %v413 = vmul.f32 %v405, %v397
  %v414 = vmul.f32 %v406, %v398
  %419 = vrot.lane.b32.xlu0 %v407, 64
  %v420 = vpop.permute.xlu0 %419
  %421 = vrot.lane.b32.xlu0 %v409, 64
  %v422 = vpop.permute.xlu0 %421
  %423 = vrot.lane.b32.xlu0 %v411, 64
  %v424 = vpop.permute.xlu0 %423
  %425 = vrot.lane.b32.xlu0 %v413, 64
  %v426 = vpop.permute.xlu0 %425
  %v431 = vsel %vm86, 0.0, %v420
  %v432 = vsel %vm86, %v408, %v422
  %v433 = vsel %vm86, %v410, %v424
  %v434 = vsel %vm86, %v412, %v426
  %v435 = vld [vmem:[%s3] sm:$0xff]
  %v436 = vld [vmem:[%s3 + $0x8] sm:$0xff]
  %v437 = vld [vmem:[%s3 + $0x10] sm:$0xff]
  %v438 = vld [vmem:[%s3 + $0x18] sm:$0xff]
  %v439 = vld [vmem:[%s3 + $0x20] sm:$0xff]
  %v440 = vld [vmem:[%s3 + $0x28] sm:$0xff]
  %v441 = vld [vmem:[%s3 + $0x30] sm:$0xff]
  %v442 = vld [vmem:[%s3 + $0x38] sm:$0xff]
  %v443 = vld [vmem:[%s3 + $0x40] sm:$0xff]
  %v444 = vld [vmem:[%s3 + $0x48] sm:$0xff]
  %v445 = vld [vmem:[%s3 + $0x50] sm:$0xff]
  %v446 = vld [vmem:[%s3 + $0x58] sm:$0xff]
  %v447 = vld [vmem:[%s3 + $0x60] sm:$0xff]
  %v448 = vld [vmem:[%s3 + $0x68] sm:$0xff]
  %v449 = vld [vmem:[%s3 + $0x70] sm:$0xff]
  %v450 = vld [vmem:[%s3 + $0x78] sm:$0xff]
  %v451 = vld [vmem:[%s3 + $0x80] sm:$0xff]
  %v452 = vld [vmem:[%s3 + $0x88] sm:$0xff]
  %v453 = vld [vmem:[%s3 + $0x90] sm:$0xff]
  %v454 = vld [vmem:[%s3 + $0x98] sm:$0xff]
  %v455 = vld [vmem:[%s3 + $0xa0] sm:$0xff]
  %v456 = vld [vmem:[%s3 + $0xa8] sm:$0xff]
  %v457 = vld [vmem:[%s3 + $0xb0] sm:$0xff]
  %v458 = vld [vmem:[%s3 + $0xb8] sm:$0xff]
  %v459 = vld [vmem:[%s4] sm:$0x1]
  %v461 = vlaneseq
  %v462 = vshrl.u32 %v461, 7
  %v463 = vsub.s32 0, %v462
  %v464 = vrot.slane %v459, %v463
  %v467 = vsel %vm86, %v408, 0
  %v470 = vsel %vm86, %v410, 0
  %v473 = vsel %vm86, %v412, 0
  %v476 = vsel %vm86, %v414, 0
  %478 = vmatprep.subr.mxu0 0.0
  %479 = vmatpush1.msra.mxu0 %v435
  %480 = vmatprep.subr.mxu0 0.0
  %481 = vmatpush1.msra.mxu0 %v436
  %482 = vmatprep.subr.mxu0 0.0
  %483 = vmatpush1.msra.mxu0 %v437
  %484 = vmatprep.subr.mxu0 0.0
  %485 = vmatpush1.msra.mxu0 %v438
  %486 = vmatprep.subr.mxu0 0.0
  %487 = vmatpush1.msra.mxu0 %v439
  %488 = vmatprep.subr.mxu0 0.0
  %489 = vmatpush1.msra.mxu0 %v440
  %490 = vmatprep.subr.mxu0 0.0
  %491 = vmatpush1.msra.mxu0 %v441
  %492 = vmatprep.subr.mxu0 0.0
  %493 = vmatpush1.msra.mxu0 %v442
  %494 = vmatprep.subr.mxu0 0.0
  %495 = vmatpush1.msra.mxu0 %v443
  %496 = vmatprep.subr.mxu0 0.0
  %497 = vmatpush1.msra.mxu0 %v444
  %498 = vmatprep.subr.mxu0 0.0
  %499 = vmatpush1.msra.mxu0 %v445
  %500 = vmatprep.subr.mxu0 0.0
  %501 = vmatpush1.msra.mxu0 %v446
  %502 = vmatprep.subr.mxu0 0.0
  %503 = vmatpush1.msra.mxu0 %v447
  %504 = vmatprep.subr.mxu0 0.0
  %505 = vmatpush1.msra.mxu0 %v448
  %506 = vmatprep.subr.mxu0 0.0
  %507 = vmatpush1.msra.mxu0 %v449
  %508 = vmatprep.subr.mxu0 0.0
  %509 = vmatpush1.msra.mxu0 %v450
  %510 = vmatprep.subr.mxu0 0.0
  %511 = vmatpush1.msra.mxu0 %v451
  %512 = vmatprep.subr.mxu0 0.0
  %513 = vmatpush1.msra.mxu0 %v452
  %514 = vmatprep.subr.mxu0 0.0
  %515 = vmatpush1.msra.mxu0 %v453
  %516 = vmatprep.subr.mxu0 0.0
  %517 = vmatpush1.msra.mxu0 %v454
  %518 = vmatprep.subr.mxu0 0.0
  %519 = vmatpush1.msra.mxu0 %v455
  %520 = vmatprep.subr.mxu0 0.0
  %521 = vmatpush1.msra.mxu0 %v456
  %522 = vmatprep.subr.mxu0 0.0
  %523 = vmatpush1.msra.mxu0 %v457
  %524 = vmatprep.subr.mxu0 0.0
  %525 = vmatpush1.msra.mxu0 %v458
  %526 = vmatprep.subr.mxu0 0.0
  %527 = vmatpush1.msra.mxu0 0.0
  %528 = vmatprep.subr.mxu0 0.0
  %529 = vmatpush1.msra.mxu0 0.0
  %530 = vmatprep.subr.mxu0 0.0
  %531 = vmatpush1.msra.mxu0 0.0
  %532 = vmatprep.subr.mxu0 0.0
  %533 = vmatpush1.msra.mxu0 0.0
  %534 = vmatprep.subr.mxu0 0.0
  %535 = vmatpush1.msra.mxu0 0.0
  %536 = vmatprep.subr.mxu0 0.0
  %537 = vmatpush1.msra.mxu0 0.0
  %538 = vmatprep.subr.mxu0 0.0
  %539 = vmatpush1.msra.mxu0 0.0
  %540 = vmatprep.subr.mxu0 0.0
  %541 = vmatpush1.msra.mxu0 0.0
  %542 = vmatprep.mubr.f32.mxu0 %v467
  %543 = vmatmul.mubr.f32.gmra.mrb[0].mxu0 %v431
  %v544 = vpop.f32.mrb[0].mxu0
  %v545 = vadd.f32 %v464, %v544
  %v546 = vpop.f32.mrb[0].mxu0
  %547 = vmatprep.mubr.f32.mxu0 %v470
  %548 = vmatmul.mubr.f32.gmra.mrb[0].mxu0 %v432
  %v549 = vpop.f32.mrb[0].mxu0
  %v550 = vadd.f32 %v464, %v549
  %v551 = vpop.f32.mrb[0].mxu0
  %552 = vmatprep.mubr.f32.mxu0 %v473
  %553 = vmatmul.mubr.f32.gmra.mrb[0].mxu0 %v433
  %v554 = vpop.f32.mrb[0].mxu0
  %v555 = vadd.f32 %v464, %v554
  %v556 = vpop.f32.mrb[0].mxu0
  %557 = vmatprep.mubr.f32.mxu0 %v476
  %558 = vmatmul.mubr.f32.gmra.mrb[0].mxu0 %v434
  %v559 = vpop.f32.mrb[0].mxu0
  %v560 = vadd.f32 %v464, %v559
  %v561 = vpop.f32.mrb[0].mxu0
  %562 = vdwg.mxu0
  %v563 = vand.u32 2147483647, %v545
  %v564 = vand.u32 2147483647, %v550
  %v565 = vand.u32 2147483647, %v555
  %v566 = vand.u32 2147483647, %v560
  %v567 = vsub.f32 0.0, %v563
  %v568 = vsub.f32 0.0, %v564
  %v569 = vsub.f32 0.0, %v565
  %v570 = vsub.f32 0.0, %v566
  %v571 = vmul.f32 %v567, 1.442695
  %v572 = vpow.pop %v571
  %v573 = vmul.f32 %v568, 1.442695
  %v574 = vpow.pop %v573
  %v575 = vmul.f32 %v569, 1.442695
  %v576 = vpow.pop %v575
  %v577 = vmul.f32 %v570, 1.442695
  %v578 = vpow.pop %v577
  %vm579 = vcmp.ge.f32.partialorder %v545, 0.0
  %vm580 = vcmp.ge.f32.partialorder %v550, 0.0
  %vm581 = vcmp.ge.f32.partialorder %v555, 0.0
  %vm582 = vcmp.ge.f32.partialorder %v560, 0.0
  %v583 = vmul.f32 %v572, 2.0
  %v584 = vmul.f32 %v574, 2.0
  %v585 = vmul.f32 %v576, 2.0
  %v586 = vmul.f32 %v578, 2.0
  %v587 = vadd.f32 %v583, 1.0
  %v588 = vadd.f32 %v584, 1.0
  %v589 = vadd.f32 %v585, 1.0
  %v590 = vadd.f32 %v586, 1.0
  %v591 = vadd.f32 %v572, 2.0
  %v592 = vadd.f32 %v574, 2.0
  %v593 = vadd.f32 %v576, 2.0
  %v594 = vadd.f32 %v578, 2.0
  %v595 = vmul.f32 %v572, %v591
  %v596 = vmul.f32 %v574, %v592
  %v597 = vmul.f32 %v576, %v593
  %v598 = vmul.f32 %v578, %v594
  %v599 = vsel %vm579, %v587, %v595
  %v600 = vsel %vm580, %v588, %v596
  %v601 = vsel %vm581, %v589, %v597
  %v602 = vsel %vm582, %v590, %v598
  %v603 = vmul.f32 %v583, %v572
  %v604 = vmul.f32 %v584, %v574
  %v605 = vmul.f32 %v585, %v576
  %v606 = vmul.f32 %v586, %v578
  %v607 = vadd.f32 %v587, %v603
  %v608 = vadd.f32 %v588, %v604
  %v609 = vadd.f32 %v589, %v605
  %v610 = vadd.f32 %v590, %v606
  %v611 = vadd.f32 %v595, 2.0
  %v612 = vadd.f32 %v596, 2.0
  %v613 = vadd.f32 %v597, 2.0
  %v614 = vadd.f32 %v598, 2.0
  %v615 = vsel %vm579, %v607, %v611
  %v616 = vsel %vm580, %v608, %v612
  %v617 = vsel %vm581, %v609, %v613
  %v618 = vsel %vm582, %v610, %v614
  %v619 = vrcp.pop %v615
  %v620 = vrcp.pop %v616
  %v621 = vrcp.pop %v617
  %v622 = vrcp.pop %v618
  %v623 = vmul.f32 %v615, %v619
  %v624 = vmul.f32 %v616, %v620
  %v625 = vmul.f32 %v617, %v621
  %v626 = vmul.f32 %v618, %v622
  %v627 = vsub.f32 2.0, %v623
  %v628 = vsub.f32 2.0, %v624
  %v629 = vsub.f32 2.0, %v625
  %v630 = vsub.f32 2.0, %v626
  %v631 = vmul.f32 %v619, %v627
  %v632 = vmul.f32 %v620, %v628
  %v633 = vmul.f32 %v621, %v629
  %v634 = vmul.f32 %v622, %v630
  %v635 = vmul.f32 %v545, %v599
  %v636 = vmul.f32 %v550, %v600
  %v637 = vmul.f32 %v555, %v601
  %v638 = vmul.f32 %v560, %v602
  %v639 = vmul.f32 %v635, %v631
  %v640 = vmul.f32 %v636, %v632
  %v641 = vmul.f32 %v637, %v633
  %v642 = vmul.f32 %v638, %v634
  %645 = vrot.lane.b32.xlu0 %v639, 64
  %v646 = vpop.permute.xlu0 %645
  %647 = vrot.lane.b32.xlu0 %v641, 64
  %v648 = vpop.permute.xlu0 %647
  %v651 = vsel %vm86, 0.0, %v646
  %v652 = vsel %vm86, %v640, %v648
  %v653 = vld [vmem:[%s5] sm:$0xff]
  %v654 = vld [vmem:[%s5 + $0x8] sm:$0xff]
  %v655 = vld [vmem:[%s5 + $0x10] sm:$0xff]
  %v656 = vld [vmem:[%s5 + $0x18] sm:$0xff]
  %v657 = vld [vmem:[%s5 + $0x20] sm:$0xff]
  %v658 = vld [vmem:[%s5 + $0x28] sm:$0xff]
  %v659 = vld [vmem:[%s5 + $0x30] sm:$0xff]
  %v660 = vld [vmem:[%s5 + $0x38] sm:$0xff]
  %v661 = vld [vmem:[%s5 + $0x40] sm:$0xff]
  %v662 = vld [vmem:[%s5 + $0x48] sm:$0xff]
  %v663 = vld [vmem:[%s5 + $0x50] sm:$0xff]
  %v664 = vld [vmem:[%s5 + $0x58] sm:$0xff]
  %v665 = vld [vmem:[%s5 + $0x60] sm:$0xff]
  %v666 = vld [vmem:[%s5 + $0x68] sm:$0xff]
  %v667 = vld [vmem:[%s5 + $0x70] sm:$0xff]
  %v668 = vld [vmem:[%s5 + $0x78] sm:$0xff]
  %v669 = vld [vmem:[%s5 + $0x80] sm:$0xff]
  %v670 = vld [vmem:[%s5 + $0x88] sm:$0xff]
  %v671 = vld [vmem:[%s5 + $0x90] sm:$0xff]
  %v672 = vld [vmem:[%s5 + $0x98] sm:$0xff]
  %v673 = vld [vmem:[%s5 + $0xa0] sm:$0xff]
  %v674 = vld [vmem:[%s5 + $0xa8] sm:$0xff]
  %v675 = vld [vmem:[%s5 + $0xb0] sm:$0xff]
  %v676 = vld [vmem:[%s5 + $0xb8] sm:$0xff]
  %v677 = vld [vmem:[%s6] sm:$0x1]
  %v679 = vlaneseq
  %v680 = vshrl.u32 %v679, 7
  %v681 = vsub.s32 0, %v680
  %v682 = vrot.slane %v677, %v681
  %v685 = vsel %vm86, %v640, 0
  %v688 = vsel %vm86, %v642, 0
  %690 = vmatprep.subr.mxu0 0.0
  %691 = vmatpush1.msra.mxu0 %v653
  %692 = vmatprep.subr.mxu0 0.0
  %693 = vmatpush1.msra.mxu0 %v654
  %694 = vmatprep.subr.mxu0 0.0
  %695 = vmatpush1.msra.mxu0 %v655
  %696 = vmatprep.subr.mxu0 0.0
  %697 = vmatpush1.msra.mxu0 %v656
  %698 = vmatprep.subr.mxu0 0.0
  %699 = vmatpush1.msra.mxu0 %v657
  %700 = vmatprep.subr.mxu0 0.0
  %701 = vmatpush1.msra.mxu0 %v658
  %702 = vmatprep.subr.mxu0 0.0
  %703 = vmatpush1.msra.mxu0 %v659
  %704 = vmatprep.subr.mxu0 0.0
  %705 = vmatpush1.msra.mxu0 %v660
  %706 = vmatprep.subr.mxu0 0.0
  %707 = vmatpush1.msra.mxu0 %v661
  %708 = vmatprep.subr.mxu0 0.0
  %709 = vmatpush1.msra.mxu0 %v662
  %710 = vmatprep.subr.mxu0 0.0
  %711 = vmatpush1.msra.mxu0 %v663
  %712 = vmatprep.subr.mxu0 0.0
  %713 = vmatpush1.msra.mxu0 %v664
  %714 = vmatprep.subr.mxu0 0.0
  %715 = vmatpush1.msra.mxu0 %v665
  %716 = vmatprep.subr.mxu0 0.0
  %717 = vmatpush1.msra.mxu0 %v666
  %718 = vmatprep.subr.mxu0 0.0
  %719 = vmatpush1.msra.mxu0 %v667
  %720 = vmatprep.subr.mxu0 0.0
  %721 = vmatpush1.msra.mxu0 %v668
  %722 = vmatprep.subr.mxu0 0.0
  %723 = vmatpush1.msra.mxu0 %v669
  %724 = vmatprep.subr.mxu0 0.0
  %725 = vmatpush1.msra.mxu0 %v670
  %726 = vmatprep.subr.mxu0 0.0
  %727 = vmatpush1.msra.mxu0 %v671
  %728 = vmatprep.subr.mxu0 0.0
  %729 = vmatpush1.msra.mxu0 %v672
  %730 = vmatprep.subr.mxu0 0.0
  %731 = vmatpush1.msra.mxu0 %v673
  %732 = vmatprep.subr.mxu0 0.0
  %733 = vmatpush1.msra.mxu0 %v674
  %734 = vmatprep.subr.mxu0 0.0
  %735 = vmatpush1.msra.mxu0 %v675
  %736 = vmatprep.subr.mxu0 0.0
  %737 = vmatpush1.msra.mxu0 %v676
  %738 = vmatprep.subr.mxu0 0.0
  %739 = vmatpush1.msra.mxu0 0.0
  %740 = vmatprep.subr.mxu0 0.0
  %741 = vmatpush1.msra.mxu0 0.0
  %742 = vmatprep.subr.mxu0 0.0
  %743 = vmatpush1.msra.mxu0 0.0
  %744 = vmatprep.subr.mxu0 0.0
  %745 = vmatpush1.msra.mxu0 0.0
  %746 = vmatprep.subr.mxu0 0.0
  %747 = vmatpush1.msra.mxu0 0.0
  %748 = vmatprep.subr.mxu0 0.0
  %749 = vmatpush1.msra.mxu0 0.0
  %750 = vmatprep.subr.mxu0 0.0
  %751 = vmatpush1.msra.mxu0 0.0
  %752 = vmatprep.subr.mxu0 0.0
  %753 = vmatpush1.msra.mxu0 0.0
  %754 = vmatprep.mubr.f32.mxu0 %v685
  %755 = vmatmul.mubr.f32.gmra.mrb[0].mxu0 %v651
  %v756 = vpop.f32.mrb[0].mxu0
  %v757 = vadd.f32 %v682, %v756
  %v758 = vpop.f32.mrb[0].mxu0
  %759 = vmatprep.mubr.f32.mxu0 %v688
  %760 = vmatmul.mubr.f32.gmra.mrb[0].mxu0 %v652
  %v761 = vpop.f32.mrb[0].mxu0
  %v762 = vadd.f32 %v682, %v761
  %v763 = vpop.f32.mrb[0].mxu0
  %764 = vdwg.mxu0
  %v765 = vand.u32 2147483647, %v757
  %v766 = vand.u32 2147483647, %v762
  %v767 = vsub.f32 0.0, %v765
  %v768 = vsub.f32 0.0, %v766
  %v769 = vmul.f32 %v767, 1.442695
  %v770 = vpow.pop %v769
  %v771 = vmul.f32 %v768, 1.442695
  %v772 = vpow.pop %v771
  %vm773 = vcmp.ge.f32.partialorder %v757, 0.0
  %vm774 = vcmp.ge.f32.partialorder %v762, 0.0
  %v775 = vmul.f32 %v770, 2.0
  %v776 = vmul.f32 %v772, 2.0
  %v777 = vadd.f32 %v775, 1.0
  %v778 = vadd.f32 %v776, 1.0
  %v779 = vadd.f32 %v770, 2.0
  %v780 = vadd.f32 %v772, 2.0
  %v781 = vmul.f32 %v770, %v779
  %v782 = vmul.f32 %v772, %v780
  %v783 = vsel %vm773, %v777, %v781
  %v784 = vsel %vm774, %v778, %v782
  %v785 = vmul.f32 %v775, %v770
  %v786 = vmul.f32 %v776, %v772
  %v787 = vadd.f32 %v777, %v785
  %v788 = vadd.f32 %v778, %v786
  %v789 = vadd.f32 %v781, 2.0
  %v790 = vadd.f32 %v782, 2.0
  %v791 = vsel %vm773, %v787, %v789
  %v792 = vsel %vm774, %v788, %v790
  %v793 = vrcp.pop %v791
  %v794 = vrcp.pop %v792
  %v795 = vmul.f32 %v791, %v793
  %v796 = vmul.f32 %v792, %v794
  %v797 = vsub.f32 2.0, %v795
  %v798 = vsub.f32 2.0, %v796
  %v799 = vmul.f32 %v793, %v797
  %v800 = vmul.f32 %v794, %v798
  %v801 = vmul.f32 %v757, %v783
  %v802 = vmul.f32 %v762, %v784
  %v803 = vmul.f32 %v801, %v799
  %v804 = vmul.f32 %v802, %v800
  %806 = vrot.lane.b32.xlu0 %v803, 64
  %v807 = vpop.permute.xlu0 %806
  %v809 = vsel %vm86, 0.0, %v807
  %v810 = vld [vmem:[%s7] sm:$0xff]
  %v811 = vld [vmem:[%s7 + $0x8] sm:$0xff]
  %v812 = vld [vmem:[%s7 + $0x10] sm:$0xff]
  %v813 = vld [vmem:[%s7 + $0x18] sm:$0xff]
  %v814 = vld [vmem:[%s7 + $0x20] sm:$0xff]
  %v815 = vld [vmem:[%s7 + $0x28] sm:$0xff]
  %v816 = vld [vmem:[%s7 + $0x30] sm:$0xff]
  %v817 = vld [vmem:[%s7 + $0x38] sm:$0xff]
  %v818 = vld [vmem:[%s7 + $0x40] sm:$0xff]
  %v819 = vld [vmem:[%s7 + $0x48] sm:$0xff]
  %v820 = vld [vmem:[%s7 + $0x50] sm:$0xff]
  %v821 = vld [vmem:[%s7 + $0x58] sm:$0xff]
  %v822 = vld [vmem:[%s7 + $0x60] sm:$0xff]
  %v823 = vld [vmem:[%s7 + $0x68] sm:$0xff]
  %v824 = vld [vmem:[%s7 + $0x70] sm:$0xff]
  %v825 = vld [vmem:[%s7 + $0x78] sm:$0xff]
  %v826 = vld [vmem:[%s7 + $0x80] sm:$0xff]
  %v827 = vld [vmem:[%s7 + $0x88] sm:$0xff]
  %v828 = vld [vmem:[%s7 + $0x90] sm:$0xff]
  %v829 = vld [vmem:[%s7 + $0x98] sm:$0xff]
  %v830 = vld [vmem:[%s7 + $0xa0] sm:$0xff]
  %v831 = vld [vmem:[%s7 + $0xa8] sm:$0xff]
  %v832 = vld [vmem:[%s7 + $0xb0] sm:$0xff]
  %v833 = vld [vmem:[%s7 + $0xb8] sm:$0xff]
  %v834 = vld [vmem:[%s8] sm:$0x1]
  %v836 = vlaneseq
  %v837 = vshrl.u32 %v836, 7
  %v838 = vsub.s32 0, %v837
  %v839 = vrot.slane %v834, %v838
  %v842 = vsel %vm86, %v804, 0
  %844 = vmatprep.subr.mxu0 0.0
  %845 = vmatpush1.msra.mxu0 %v810
  %846 = vmatprep.subr.mxu0 0.0
  %847 = vmatpush1.msra.mxu0 %v811
  %848 = vmatprep.subr.mxu0 0.0
  %849 = vmatpush1.msra.mxu0 %v812
  %850 = vmatprep.subr.mxu0 0.0
  %851 = vmatpush1.msra.mxu0 %v813
  %852 = vmatprep.subr.mxu0 0.0
  %853 = vmatpush1.msra.mxu0 %v814
  %854 = vmatprep.subr.mxu0 0.0
  %855 = vmatpush1.msra.mxu0 %v815
  %856 = vmatprep.subr.mxu0 0.0
  %857 = vmatpush1.msra.mxu0 %v816
  %858 = vmatprep.subr.mxu0 0.0
  %859 = vmatpush1.msra.mxu0 %v817
  %860 = vmatprep.subr.mxu0 0.0
  %861 = vmatpush1.msra.mxu0 %v818
  %862 = vmatprep.subr.mxu0 0.0
  %863 = vmatpush1.msra.mxu0 %v819
  %864 = vmatprep.subr.mxu0 0.0
  %865 = vmatpush1.msra.mxu0 %v820
  %866 = vmatprep.subr.mxu0 0.0
  %867 = vmatpush1.msra.mxu0 %v821
  %868 = vmatprep.subr.mxu0 0.0
  %869 = vmatpush1.msra.mxu0 %v822
  %870 = vmatprep.subr.mxu0 0.0
  %871 = vmatpush1.msra.mxu0 %v823
  %872 = vmatprep.subr.mxu0 0.0
  %873 = vmatpush1.msra.mxu0 %v824
  %874 = vmatprep.subr.mxu0 0.0
  %875 = vmatpush1.msra.mxu0 %v825
  %876 = vmatprep.subr.mxu0 0.0
  %877 = vmatpush1.msra.mxu0 %v826
  %878 = vmatprep.subr.mxu0 0.0
  %879 = vmatpush1.msra.mxu0 %v827
  %880 = vmatprep.subr.mxu0 0.0
  %881 = vmatpush1.msra.mxu0 %v828
  %882 = vmatprep.subr.mxu0 0.0
  %883 = vmatpush1.msra.mxu0 %v829
  %884 = vmatprep.subr.mxu0 0.0
  %885 = vmatpush1.msra.mxu0 %v830
  %886 = vmatprep.subr.mxu0 0.0
  %887 = vmatpush1.msra.mxu0 %v831
  %888 = vmatprep.subr.mxu0 0.0
  %889 = vmatpush1.msra.mxu0 %v832
  %890 = vmatprep.subr.mxu0 0.0
  %891 = vmatpush1.msra.mxu0 %v833
  %892 = vmatprep.subr.mxu0 0.0
  %893 = vmatpush1.msra.mxu0 0.0
  %894 = vmatprep.subr.mxu0 0.0
  %895 = vmatpush1.msra.mxu0 0.0
  %896 = vmatprep.subr.mxu0 0.0
  %897 = vmatpush1.msra.mxu0 0.0
  %898 = vmatprep.subr.mxu0 0.0
  %899 = vmatpush1.msra.mxu0 0.0
  %900 = vmatprep.subr.mxu0 0.0
  %901 = vmatpush1.msra.mxu0 0.0
  %902 = vmatprep.subr.mxu0 0.0
  %903 = vmatpush1.msra.mxu0 0.0
  %904 = vmatprep.subr.mxu0 0.0
  %905 = vmatpush1.msra.mxu0 0.0
  %906 = vmatprep.subr.mxu0 0.0
  %907 = vmatpush1.msra.mxu0 0.0
  %908 = vmatprep.mubr.f32.mxu0 %v842
  %909 = vmatmul.mubr.f32.gmra.mrb[0].mxu0 %v809
  %v910 = vpop.f32.mrb[0].mxu0
  %v911 = vadd.f32 %v839, %v910
  %v912 = vpop.f32.mrb[0].mxu0
  %913 = vdwg.mxu0
  %v914 = vand.u32 2147483647, %v911
  %v915 = vsub.f32 0.0, %v914
  %v916 = vmul.f32 %v915, 1.442695
  %v917 = vpow.pop %v916
  %vm918 = vcmp.ge.f32.partialorder %v911, 0.0
  %v919 = vmul.f32 %v917, 2.0
  %v920 = vadd.f32 %v919, 1.0
  %v921 = vadd.f32 %v917, 2.0
  %v922 = vmul.f32 %v917, %v921
  %v923 = vsel %vm918, %v920, %v922
  %v924 = vmul.f32 %v919, %v917
  %v925 = vadd.f32 %v920, %v924
  %v926 = vadd.f32 %v922, 2.0
  %v927 = vsel %vm918, %v925, %v926
  %v928 = vrcp.pop %v927
  %v929 = vmul.f32 %v927, %v928
  %v930 = vsub.f32 2.0, %v929
  %v931 = vmul.f32 %v928, %v930
  %v932 = vmul.f32 %v911, %v923
  %v933 = vmul.f32 %v932, %v931
  %v934 = vld [vmem:[%s9] sm:$0xff]
  %v935 = vld [vmem:[%s9 + $0x8] sm:$0xff]
  %v936 = vld [vmem:[%s9 + $0x10] sm:$0xff]
  %v937 = vld [vmem:[%s9 + $0x18] sm:$0xff]
  %v938 = vld [vmem:[%s10] sm:$0x1]
  %v940 = vlaneseq
  %v941 = vshrl.u32 %v940, 7
  %v942 = vsub.s32 0, %v941
  %v943 = vrot.slane %v938, %v942
  %vm945 = vcmask 261120
  %v947 = vsel %vm945, %v933, 0
  %949 = vmatprep.subr.mxu0 0.0
  %950 = vmatpush1.msra.mxu0 %v934
  %951 = vmatprep.subr.mxu0 0.0
  %952 = vmatpush1.msra.mxu0 %v935
  %953 = vmatprep.subr.mxu0 0.0
  %954 = vmatpush1.msra.mxu0 %v936
  %955 = vmatprep.subr.mxu0 0.0
  %956 = vmatpush1.msra.mxu0 %v937
  %957 = vmatprep.subr.mxu0 0.0
  %958 = vmatpush1.msra.mxu0 0.0
  %959 = vmatprep.subr.mxu0 0.0
  %960 = vmatpush1.msra.mxu0 0.0
  %961 = vmatprep.subr.mxu0 0.0
  %962 = vmatpush1.msra.mxu0 0.0
  %963 = vmatprep.subr.mxu0 0.0
  %964 = vmatpush1.msra.mxu0 0.0
  %965 = vmatprep.subr.mxu0 0.0
  %966 = vmatpush1.msra.mxu0 0.0
  %967 = vmatprep.subr.mxu0 0.0
  %968 = vmatpush1.msra.mxu0 0.0
  %969 = vmatprep.subr.mxu0 0.0
  %970 = vmatpush1.msra.mxu0 0.0
  %971 = vmatprep.subr.mxu0 0.0
  %972 = vmatpush1.msra.mxu0 0.0
  %973 = vmatprep.subr.mxu0 0.0
  %974 = vmatpush1.msra.mxu0 0.0
  %975 = vmatprep.subr.mxu0 0.0
  %976 = vmatpush1.msra.mxu0 0.0
  %977 = vmatprep.subr.mxu0 0.0
  %978 = vmatpush1.msra.mxu0 0.0
  %979 = vmatprep.subr.mxu0 0.0
  %980 = vmatpush1.msra.mxu0 0.0
  %981 = vmatprep.subr.mxu0 0.0
  %982 = vmatpush1.msra.mxu0 0.0
  %983 = vmatprep.subr.mxu0 0.0
  %984 = vmatpush1.msra.mxu0 0.0
  %985 = vmatprep.subr.mxu0 0.0
  %986 = vmatpush1.msra.mxu0 0.0
  %987 = vmatprep.subr.mxu0 0.0
  %988 = vmatpush1.msra.mxu0 0.0
  %989 = vmatprep.subr.mxu0 0.0
  %990 = vmatpush1.msra.mxu0 0.0
  %991 = vmatprep.subr.mxu0 0.0
  %992 = vmatpush1.msra.mxu0 0.0
  %993 = vmatprep.subr.mxu0 0.0
  %994 = vmatpush1.msra.mxu0 0.0
  %995 = vmatprep.subr.mxu0 0.0
  %996 = vmatpush1.msra.mxu0 0.0
  %997 = vmatprep.subr.mxu0 0.0
  %998 = vmatpush1.msra.mxu0 0.0
  %999 = vmatprep.subr.mxu0 0.0
  %1000 = vmatpush1.msra.mxu0 0.0
  %1001 = vmatprep.subr.mxu0 0.0
  %1002 = vmatpush1.msra.mxu0 0.0
  %1003 = vmatprep.subr.mxu0 0.0
  %1004 = vmatpush1.msra.mxu0 0.0
  %1005 = vmatprep.subr.mxu0 0.0
  %1006 = vmatpush1.msra.mxu0 0.0
  %1007 = vmatprep.subr.mxu0 0.0
  %1008 = vmatpush1.msra.mxu0 0.0
  %1009 = vmatprep.subr.mxu0 0.0
  %1010 = vmatpush1.msra.mxu0 0.0
  %1011 = vmatprep.subr.mxu0 0.0
  %1012 = vmatpush1.msra.mxu0 0.0
  %1013 = vmatprep.mubr.f32.mxu0 0.0
  %1014 = vmatmul.mubr.f32.gmra.mrb[0].mxu0 %v947
  %v1015 = vpop.f32.mrb[0].mxu0
  %v1016 = vadd.f32 %v943, %v1015
  %v1017 = vpop.f32.mrb[0].mxu0
  %1018 = vdwg.mxu0
  %1019 = vst.msk [vmem:[%s11] sm:$0xff] %vm945, %v1016
  // Predicated region
  $region46: #{featmap_to_latent.1} parent=0 // pred_check
    _
  $region47: #{featmap_to_latent.1} parent=0 // pred_check_branch
    %1021 = sbr.rel (0) target = $region49
  $region48: #{featmap_to_latent.1} parent=0 // pred_region
    _
  $region49: #{featmap_to_latent.1} parent=0 // pred_fallthru
    _
  // Predicated region
  $region50: #{featmap_to_latent.1} parent=0 // pred_check
    _
  $region51: #{featmap_to_latent.1} parent=0 // pred_check_branch
    %1023 = sbr.rel (0) target = $region53
  $region52: #{featmap_to_latent.1} parent=0 // pred_region
    _
  $region53: #{featmap_to_latent.1} parent=0 // pred_fallthru
    _

</llo_original>
